<compile_context>
chip_gen: v5e
topology: v5e:2x2
jax: 0.10.0
libtpu: 0.0.40
codegen_flags: <defaults>
</compile_context>

<pallas_src>
import math

import jax
import jax.numpy as jnp
from jax.experimental import pallas as pl
from jax.experimental.pallas import tpu as pltpu

EPS = 1e-5                      # torch.nn.LayerNorm default
GELU_APPROXIMATE = True         # tanh-approx GELU (per perf review); False = exact erf
_SQRT_2_OVER_PI = math.sqrt(2.0 / math.pi)
_HAS_BUFFERED = hasattr(pl, "Buffered")


def _gelu(x):
    if GELU_APPROXIMATE:
        # tanh-approximate GELU: routes the transcendental through the EUP tanh
        # unit (otherwise idle); max abs deviation from exact erf GELU ~3e-3.
        return 0.5 * x * (1.0 + jnp.tanh(_SQRT_2_OVER_PI * (x + 0.044715 * x * x * x)))
    # PyTorch nn.GELU() default: exact erf formulation.
    return 0.5 * x * (1.0 + jax.lax.erf(x * (1.0 / math.sqrt(2.0))))


def _layernorm(x, gamma, beta):
    # Two-pass (centered) variance: numerically safer than E[x^2] - mu^2.
    mu = jnp.mean(x, axis=-1, keepdims=True)
    xc = x - mu
    var = jnp.mean(xc * xc, axis=-1, keepdims=True)
    return xc * jax.lax.rsqrt(var + EPS) * gamma + beta


# ----------------------------------------------------------------------------
# Kernel bodies.  All weights arrive in natural PyTorch (in, out) orientation:
#   tw1 (S, Ct), tw2 (Ct, S), cw1 (D, Cs), cw2 (Cs, D)  -- bf16
#   biases as (1, out) rows, LN gamma/beta as (1, D)    -- f32
# ----------------------------------------------------------------------------
def _mixer_kernel_batched(x_ref,
                          g1_ref, b1_ref,           # ln1
                          tw1_ref, tb1_ref,         # token fc1
                          tw2_ref, tb2_ref,         # token fc2
                          g2_ref, b2_ref,           # ln2
                          cw1_ref, cb1_ref,         # channel fc1
                          cw2_ref, cb2_ref,         # channel fc2
                          o_ref):
    f32, bf16 = jnp.float32, jnp.bfloat16
    x = x_ref[...].astype(f32)                                  # (Bb, S, D)
    Bb, S, D = x.shape

    # ---- LayerNorm 1 ----
    xn = _layernorm(x, g1_ref[...], b1_ref[...])                # (Bb, S, D)

    # ---- Token mixing, batched over the whole block ----
    # (Bb,S,D) -minor swap-> (Bb,D,S) -collapse leading dims-> (Bb*D, S):
    # one big-M matmul pair instead of Bb tiny per-sample matmuls.
    xm = jnp.swapaxes(xn, 1, 2).reshape(Bb * D, S).astype(bf16)           # (Bb*D, S)
    h = jnp.dot(xm, tw1_ref[...], preferred_element_type=f32) + tb1_ref[...]   # (Bb*D, Ct)
    h = _gelu(h)
    tokm = (jnp.dot(h.astype(bf16), tw2_ref[...], preferred_element_type=f32)
            + tb2_ref[...])                                               # (Bb*D, S)
    tok = jnp.swapaxes(tokm.reshape(Bb, D, S), 1, 2)                      # (Bb, S, D)
    inter = (x + tok).reshape(Bb * S, D)        # residual; kept as a value (no scratch)

    # ---- LayerNorm 2 + channel mixing on the flattened (Bb*S, D) slab ----
    zn = _layernorm(inter, g2_ref[...], b2_ref[...])
    h2 = _gelu(jnp.dot(zn.astype(bf16), cw1_ref[...],
                       preferred_element_type=f32) + cb1_ref[...])        # (Bb*S, Cs)
    ch = (jnp.dot(h2.astype(bf16), cw2_ref[...], preferred_element_type=f32)
          + cb2_ref[...])                                                 # (Bb*S, D)

    o_ref[...] = (inter + ch).reshape(Bb, S, D).astype(o_ref.dtype)


def _mixer_kernel_looped(x_ref,
                         g1_ref, b1_ref, tw1_ref, tb1_ref, tw2_ref, tb2_ref,
                         g2_ref, b2_ref, cw1_ref, cb1_ref, cw2_ref, cb2_ref,
                         o_ref, inter_ref):
    # Conservative fallback (per-sample 2-D transposes + matmuls); only used if
    # the batched kernel fails to lower on the installed Mosaic build.
    f32, bf16 = jnp.float32, jnp.bfloat16
    x = x_ref[...].astype(f32)                                  # (Bb, S, D)
    Bb, S, D = x.shape

    xn = _layernorm(x, g1_ref[...], b1_ref[...])
    tw1, tw2 = tw1_ref[...], tw2_ref[...]
    tb1, tb2 = tb1_ref[...], tb2_ref[...]
    for b in range(Bb):                                         # static unroll
        xt = xn[b].T.astype(bf16)                                        # (D, S)
        h = _gelu(jnp.dot(xt, tw1, preferred_element_type=f32) + tb1)    # (D, Ct)
        tkT = jnp.dot(h.astype(bf16), tw2, preferred_element_type=f32) + tb2  # (D, S)
        inter_ref[b] = x[b] + tkT.T

    inter = inter_ref[...].reshape(Bb * S, D)
    zn = _layernorm(inter, g2_ref[...], b2_ref[...])
    h2 = _gelu(jnp.dot(zn.astype(bf16), cw1_ref[...],
                       preferred_element_type=f32) + cb1_ref[...])
    ch = (jnp.dot(h2.astype(bf16), cw2_ref[...], preferred_element_type=f32)
          + cb2_ref[...])
    o_ref[...] = (inter + ch).reshape(Bb, S, D).astype(o_ref.dtype)


# ----------------------------------------------------------------------------
# VMEM budgeting / grid sizing.
# ----------------------------------------------------------------------------
def _vmem_limit_bytes():
    """Generation-aware VMEM request: capacity minus 16 MiB headroom for
    compiler-internal scratch (-> ~48 MiB on v7x, ~112 MiB on v5e/v6e)."""
    cap = 64 * 1024 * 1024           # conservative default = v7x per-core VMEM
    try:
        info = pltpu.get_tpu_info()
        for name in ("vmem_capacity_bytes", "vmem_size_bytes"):
            val = getattr(info, name, None)
            if val:
                cap = int(val)
                break
    except Exception:                # hardware query unavailable: keep safe default
        pass
    return max(32 * 1024 * 1024, cap - 16 * 1024 * 1024)


def _weight_vmem_bytes(S, D, Ct, Cs, buffers):
    bf16_w = 2 * (2 * S * Ct + 2 * D * Cs)              # token + channel matmul weights
    f32_v = 4 * (5 * D + Ct + S + Cs)                    # LN params + biases
    return buffers * (bf16_w + f32_v)


def _pick_batch_block(B, S, D, Ct, Cs, vmem_limit):
    """Largest Bb whose per-step VMEM (double-buffered x/out blocks + live
    intermediates + weights) fits, keeping >= 2 grid steps per TensorCore."""
    per_sample = (
        2 * S * D * 4        # x block, double-buffered (f32 worst case)
        + 2 * S * D * 4      # out block, double-buffered
        + 4 * S * D * 4      # xn / tok / inter / zn class of live f32 values
        + 2 * S * D * 2      # bf16 matmul-operand copies
        + D * Ct * 6         # token-mix hidden (f32 + bf16 copy)
        + S * Cs * 6         # channel-mix hidden (f32 + bf16 copy)
    )
    budget = vmem_limit - _weight_vmem_bytes(S, D, Ct, Cs, buffers=2) - 4 * 1024 * 1024
    bb = max(1, int(budget) // per_sample)
    if B >= 4:
        bb = min(bb, B // 4)          # >= 2 pipelined steps on each of v7x's 2 cores
    elif B >= 2:
        bb = min(bb, B // 2)
    bb = max(1, min(bb, B))
    while B % bb:
        bb -= 1
    return bb


# ----------------------------------------------------------------------------
# pallas_call construction + wrapper.
# ----------------------------------------------------------------------------
def _build_call(B, S, D, Ct, Cs, Bb, out_dtype, *, batched, single_buffer_weights,
                vmem_limit):
    def wspec(shape):
        idx = lambda i: (0,) * len(shape)
        if single_buffer_weights:
            # Grid-invariant operand: one buffer is enough (halves weight VMEM).
            return pl.BlockSpec(shape, idx, pipeline_mode=pl.Buffered(1))
        return pl.BlockSpec(shape, idx)

    in_specs = [
        pl.BlockSpec((Bb, S, D), lambda i: (i, 0, 0)),   # x (batch-blocked)
        wspec((1, D)), wspec((1, D)),                    # ln1 gamma/beta
        wspec((S, Ct)), wspec((1, Ct)),                  # token fc1 W/b
        wspec((Ct, S)), wspec((1, S)),                   # token fc2 W/b
        wspec((1, D)), wspec((1, D)),                    # ln2 gamma/beta
        wspec((D, Cs)), wspec((1, Cs)),                  # channel fc1 W/b
        wspec((Cs, D)), wspec((1, D)),                   # channel fc2 W/b
    ]

    kernel = _mixer_kernel_batched if batched else _mixer_kernel_looped
    scratch = [] if batched else [pltpu.VMEM((Bb, S, D), jnp.float32)]

    itemsize = jnp.dtype(out_dtype).itemsize
    cost = pl.CostEstimate(
        flops=4 * B * S * D * (Ct + Cs),
        transcendentals=B * (D * Ct + S * Cs),
        bytes_accessed=2 * B * S * D * itemsize + 2 * (2 * S * Ct + 2 * D * Cs),
    )

    return pl.pallas_call(
        kernel,
        out_shape=jax.ShapeDtypeStruct((B, S, D), out_dtype),
        grid_spec=pltpu.PrefetchScalarGridSpec(
            num_scalar_prefetch=0,
            grid=(B // Bb,),
            in_specs=in_specs,
            out_specs=pl.BlockSpec((Bb, S, D), lambda i: (i, 0, 0)),
            scratch_shapes=scratch,
        ),
        compiler_params=pltpu.CompilerParams(
            dimension_semantics=("parallel",),
            vmem_limit_bytes=int(vmem_limit),
        ),
        cost_estimate=cost,
    )


def mixer_layer(x, params, block_batch=None):
    """x: (B, S, D) float32 or bfloat16.  params: dict from init_params."""
    B, S, D = x.shape
    Ct = params["tw1"].shape[1]
    Cs = params["cw1"].shape[1]
    assert params["tw1"].shape == (S, Ct) and params["cw1"].shape == (D, Cs)
    assert S % 8 == 0 and D % 128 == 0, "kernel expects S % 8 == 0 and D % 128 == 0"

    vmem_limit = _vmem_limit_bytes()
    Bb = block_batch if block_batch is not None else _pick_batch_block(
        B, S, D, Ct, Cs, vmem_limit)
    assert B % Bb == 0

    f32, bf16 = jnp.float32, jnp.bfloat16
    # Wrapper-side layout plumbing (cheap vs. the kernel): matmul weights cast
    # once to bf16, biases reshaped to (1, out) rows, LN params to (1, D).
    kargs = (
        x,
        params["g1"].reshape(1, D).astype(f32), params["b1"].reshape(1, D).astype(f32),
        params["tw1"].astype(bf16), params["tb1"].reshape(1, Ct).astype(f32),
        params["tw2"].astype(bf16), params["tb2"].reshape(1, S).astype(f32),
        params["g2"].reshape(1, D).astype(f32), params["b2"].reshape(1, D).astype(f32),
        params["cw1"].astype(bf16), params["cb1"].reshape(1, Cs).astype(f32),
        params["cw2"].astype(bf16), params["cb2"].reshape(1, D).astype(f32),
    )

    attempts = [dict(batched=True, single_buffer_weights=_HAS_BUFFERED),
                dict(batched=True, single_buffer_weights=False),
                dict(batched=False, single_buffer_weights=False)]
    seen, last_err = set(), None
    for cfg in attempts:
        key = (cfg["batched"], cfg["single_buffer_weights"])
        if key in seen:
            continue
        seen.add(key)
        try:
            return _build_call(B, S, D, Ct, Cs, Bb, x.dtype,
                               vmem_limit=vmem_limit, **cfg)(*kargs)
        except (pltpu.LoweringException, NotImplementedError, TypeError) as e:
            # Narrow fallback: only Mosaic lowering / API-availability failures
            # (e.g. Buffered(1) or 3-D minor-dim transpose unsupported).
            last_err = e
    raise last_err


# ----------------------------------------------------------------------------
# Synthetic parameters + pure-JAX reference.
# ----------------------------------------------------------------------------
def init_params(key, seqlen, hidden_dim, mlp_dim_C, mlp_dim_S):
    """Deterministic synthetic parameters.  Linear weights stored as (in, out)."""
    ks = jax.random.split(key, 4)
    f32 = jnp.float32

    def lin(k, fan_in, fan_out):
        bound = 1.0 / math.sqrt(fan_in)
        kw, kb = jax.random.split(k)
        w = jax.random.uniform(kw, (fan_in, fan_out), f32, -bound, bound)
        b = jax.random.uniform(kb, (fan_out,), f32, -bound, bound)
        return w, b

    tw1, tb1 = lin(ks[0], seqlen, mlp_dim_C)       # TokenMixing fc1
    tw2, tb2 = lin(ks[1], mlp_dim_C, seqlen)       # TokenMixing fc2
    cw1, cb1 = lin(ks[2], hidden_dim, mlp_dim_S)   # ChannelMixing fc1
    cw2, cb2 = lin(ks[3], mlp_dim_S, hidden_dim)   # ChannelMixing fc2

    return {
        "g1": jnp.ones((hidden_dim,), f32), "b1": jnp.zeros((hidden_dim,), f32),
        "g2": jnp.ones((hidden_dim,), f32), "b2": jnp.zeros((hidden_dim,), f32),
        "tw1": tw1, "tb1": tb1, "tw2": tw2, "tb2": tb2,
        "cw1": cw1, "cb1": cb1, "cw2": cw2, "cb2": cb2,
    }


def mixer_layer_ref(x, p):
    """Pure-JAX reference with the SAME bf16 matmul-operand casting and GELU
    variant as the kernel (bf16 operands intentionally diverge ~1e-2 from a
    pure-f32 PyTorch nn.Linear forward)."""
    f32, bf16 = jnp.bfloat16, jnp.float32
    bf16, f32 = jnp.bfloat16, jnp.float32
    x = x.astype(f32)
    xn = _layernorm(x, p["g1"], p["b1"])                              # (B, S, D)
    xt = jnp.swapaxes(xn, 1, 2).astype(bf16)                          # (B, D, S)
    h = _gelu(jnp.einsum("bds,sc->bdc", xt, p["tw1"].astype(bf16),
                         preferred_element_type=f32) + p["tb1"])
    tok = jnp.einsum("bdc,cs->bds", h.astype(bf16), p["tw2"].astype(bf16),
                     preferred_element_type=f32) + p["tb2"]
    inter = x + jnp.swapaxes(tok, 1, 2)
    zn = _layernorm(inter, p["g2"], p["b2"])
    h2 = _gelu(jnp.einsum("bsd,dc->bsc", zn.astype(bf16), p["cw1"].astype(bf16),
                          preferred_element_type=f32) + p["cb1"])
    ch = jnp.einsum("bsc,cd->bsd", h2.astype(bf16), p["cw2"].astype(bf16),
                    preferred_element_type=f32) + p["cb2"]
    return inter + ch


if __name__ == "__main__":
    # Small but lane-dense shapes (D, Cs multiples of 128; S multiple of 8).
    # NOTE: at these toy sizes the kernel is HBM/overhead bound; benchmark real
    # MLP-Mixer shapes (S~196 padded, D>=256) before MXU-level tuning.
    B, S, D = 8, 16, 128              # batch, seqlen, hidden_dim
    mlp_dim_C, mlp_dim_S = 64, 256

    key = jax.random.PRNGKey(0)
    kx, kp = jax.random.split(key)
    x = jax.random.normal(kx, (B, S, D), jnp.float32)
    params = init_params(kp, S, D, mlp_dim_C, mlp_dim_S)

    out = jax.block_until_ready(mixer_layer(x, params))
    ref = mixer_layer_ref(x, params)

    assert out.shape == (B, S, D)
    max_err = float(jnp.max(jnp.abs(out.astype(jnp.float32) - ref)))
    assert jnp.allclose(out.astype(jnp.float32), ref, atol=2e-2, rtol=2e-2), \
        f"mismatch vs reference: {max_err}"

    print("KERNEL_OK")
</pallas_src>

<mosaic_0001>
module attributes {stable_mosaic.version = 11 : i64} {
  func.func @_mixer_kernel_batched(%arg0: i32, %arg1: memref<2x16x128xf32, #tpu.memory_space<vmem>>, %arg2: memref<1x128xf32, #tpu.memory_space<vmem>>, %arg3: memref<1x128xf32, #tpu.memory_space<vmem>>, %arg4: memref<16x64xbf16, #tpu.memory_space<vmem>>, %arg5: memref<1x64xf32, #tpu.memory_space<vmem>>, %arg6: memref<64x16xbf16, #tpu.memory_space<vmem>>, %arg7: memref<1x16xf32, #tpu.memory_space<vmem>>, %arg8: memref<1x128xf32, #tpu.memory_space<vmem>>, %arg9: memref<1x128xf32, #tpu.memory_space<vmem>>, %arg10: memref<128x256xbf16, #tpu.memory_space<vmem>>, %arg11: memref<1x256xf32, #tpu.memory_space<vmem>>, %arg12: memref<256x128xbf16, #tpu.memory_space<vmem>>, %arg13: memref<1x128xf32, #tpu.memory_space<vmem>>, %arg14: memref<2x16x128xf32, #tpu.memory_space<vmem>>) attributes {dimension_semantics = [#tpu.dimension_semantics<parallel>], iteration_bounds = array<i64: 4>, scalar_prefetch = 0 : i64, scratch_operands = 0 : i64, tpu.core_type = #tpu.core_type<tc>, window_params = [{transform_indices = @transform_0, window_bounds = array<i64: 2, 16, 128>}, {pipeline_mode = #tpu.pipeline_mode<synchronous>, transform_indices = @transform_1, window_bounds = array<i64: 1, 128>}, {pipeline_mode = #tpu.pipeline_mode<synchronous>, transform_indices = @transform_2, window_bounds = array<i64: 1, 128>}, {pipeline_mode = #tpu.pipeline_mode<synchronous>, transform_indices = @transform_3, window_bounds = array<i64: 16, 64>}, {pipeline_mode = #tpu.pipeline_mode<synchronous>, transform_indices = @transform_4, window_bounds = array<i64: 1, 64>}, {pipeline_mode = #tpu.pipeline_mode<synchronous>, transform_indices = @transform_5, window_bounds = array<i64: 64, 16>}, {pipeline_mode = #tpu.pipeline_mode<synchronous>, transform_indices = @transform_6, window_bounds = array<i64: 1, 16>}, {pipeline_mode = #tpu.pipeline_mode<synchronous>, transform_indices = @transform_7, window_bounds = array<i64: 1, 128>}, {pipeline_mode = #tpu.pipeline_mode<synchronous>, transform_indices = @transform_8, window_bounds = array<i64: 1, 128>}, {pipeline_mode = #tpu.pipeline_mode<synchronous>, transform_indices = @transform_9, window_bounds = array<i64: 128, 256>}, {pipeline_mode = #tpu.pipeline_mode<synchronous>, transform_indices = @transform_10, window_bounds = array<i64: 1, 256>}, {pipeline_mode = #tpu.pipeline_mode<synchronous>, transform_indices = @transform_11, window_bounds = array<i64: 256, 128>}, {pipeline_mode = #tpu.pipeline_mode<synchronous>, transform_indices = @transform_12, window_bounds = array<i64: 1, 128>}, {transform_indices = @transform_13, window_bounds = array<i64: 2, 16, 128>}]} {
    %c0 = arith.constant 0 : index
    %c0_0 = arith.constant 0 : index
    %c0_1 = arith.constant 0 : index
    %0 = vector.load %arg1[%c0, %c0_0, %c0_1] : memref<2x16x128xf32, #tpu.memory_space<vmem>>, vector<2x16x128xf32>
    %c0_2 = arith.constant 0 : index
    %c0_3 = arith.constant 0 : index
    %1 = vector.load %arg2[%c0_2, %c0_3] : memref<1x128xf32, #tpu.memory_space<vmem>>, vector<1x128xf32>
    %c0_4 = arith.constant 0 : index
    %c0_5 = arith.constant 0 : index
    %2 = vector.load %arg3[%c0_4, %c0_5] : memref<1x128xf32, #tpu.memory_space<vmem>>, vector<1x128xf32>
    %cst = arith.constant dense<0.000000e+00> : vector<2x16xf32>
    %3 = vector.multi_reduction <add>, %0, %cst [2] : vector<2x16x128xf32> to vector<2x16xf32>
    %4 = vector.shape_cast %3 : vector<2x16xf32> to vector<2x16x1xf32>
    %cst_6 = arith.constant 1.280000e+02 : f32
    %5 = vector.broadcast %cst_6 : f32 to vector<2x16x1xf32>
    %6 = arith.divf %4, %5 : vector<2x16x1xf32>
    %7 = vector.broadcast %6 : vector<2x16x1xf32> to vector<2x16x128xf32>
    %8 = arith.subf %0, %7 : vector<2x16x128xf32>
    %9 = arith.mulf %8, %8 : vector<2x16x128xf32>
    %cst_7 = arith.constant dense<0.000000e+00> : vector<2x16xf32>
    %10 = vector.multi_reduction <add>, %9, %cst_7 [2] : vector<2x16x128xf32> to vector<2x16xf32>
    %11 = vector.shape_cast %10 : vector<2x16xf32> to vector<2x16x1xf32>
    %cst_8 = arith.constant 1.280000e+02 : f32
    %12 = vector.broadcast %cst_8 : f32 to vector<2x16x1xf32>
    %13 = arith.divf %11, %12 : vector<2x16x1xf32>
    %cst_9 = arith.constant 9.99999974E-6 : f32
    %14 = vector.broadcast %cst_9 : f32 to vector<2x16x1xf32>
    %15 = arith.addf %13, %14 : vector<2x16x1xf32>
    %16 = math.rsqrt %15 : vector<2x16x1xf32>
    %17 = vector.broadcast %16 : vector<2x16x1xf32> to vector<2x16x128xf32>
    %18 = arith.mulf %8, %17 : vector<2x16x128xf32>
    %19 = vector.shape_cast %1 : vector<1x128xf32> to vector<1x1x128xf32>
    %20 = vector.broadcast %19 : vector<1x1x128xf32> to vector<2x16x128xf32>
    %21 = arith.mulf %18, %20 : vector<2x16x128xf32>
    %22 = vector.shape_cast %2 : vector<1x128xf32> to vector<1x1x128xf32>
    %23 = vector.broadcast %22 : vector<1x1x128xf32> to vector<2x16x128xf32>
    %24 = arith.addf %21, %23 : vector<2x16x128xf32>
    %25 = tpu.transpose %24, [0, 2, 1] : vector<2x16x128xf32> -> vector<2x128x16xf32>
    %26 = vector.shape_cast %25 : vector<2x128x16xf32> to vector<256x16xf32>
    %27 = arith.truncf %26 : vector<256x16xf32> to vector<256x16xbf16>
    %c0_10 = arith.constant 0 : index
    %c0_11 = arith.constant 0 : index
    %28 = vector.load %arg4[%c0_10, %c0_11] : memref<16x64xbf16, #tpu.memory_space<vmem>>, vector<16x64xbf16>
    %cst_12 = arith.constant dense<0.000000e+00> : vector<256x64xf32>
    %29 = tpu.matmul %27, %28, %cst_12 {dimension_numbers = #tpu.dot_dimension_numbers<[1], [0], [0], [1], [0, 0, 1, 1], [], []>} : vector<256x16xbf16>, vector<16x64xbf16>, vector<256x64xf32> -> vector<256x64xf32>
    %c0_13 = arith.constant 0 : index
    %c0_14 = arith.constant 0 : index
    %30 = vector.load %arg5[%c0_13, %c0_14] : memref<1x64xf32, #tpu.memory_space<vmem>>, vector<1x64xf32>
    %31 = vector.broadcast %30 : vector<1x64xf32> to vector<256x64xf32>
    %32 = arith.addf %29, %31 : vector<256x64xf32>
    %cst_15 = arith.constant 5.000000e-01 : f32
    %33 = vector.broadcast %cst_15 : f32 to vector<256x64xf32>
    %34 = arith.mulf %33, %32 : vector<256x64xf32>
    %cst_16 = arith.constant 4.471500e-02 : f32
    %35 = vector.broadcast %cst_16 : f32 to vector<256x64xf32>
    %36 = arith.mulf %35, %32 : vector<256x64xf32>
    %37 = arith.mulf %36, %32 : vector<256x64xf32>
    %38 = arith.mulf %37, %32 : vector<256x64xf32>
    %39 = arith.addf %32, %38 : vector<256x64xf32>
    %cst_17 = arith.constant 0.797884583 : f32
    %40 = vector.broadcast %cst_17 : f32 to vector<256x64xf32>
    %41 = arith.mulf %40, %39 : vector<256x64xf32>
    %42 = math.tanh %41 : vector<256x64xf32>
    %cst_18 = arith.constant 1.000000e+00 : f32
    %43 = vector.broadcast %cst_18 : f32 to vector<256x64xf32>
    %44 = arith.addf %43, %42 : vector<256x64xf32>
    %45 = arith.mulf %34, %44 : vector<256x64xf32>
    %46 = arith.truncf %45 : vector<256x64xf32> to vector<256x64xbf16>
    %c0_19 = arith.constant 0 : index
    %c0_20 = arith.constant 0 : index
    %47 = vector.load %arg6[%c0_19, %c0_20] : memref<64x16xbf16, #tpu.memory_space<vmem>>, vector<64x16xbf16>
    %cst_21 = arith.constant dense<0.000000e+00> : vector<256x16xf32>
    %48 = tpu.matmul %46, %47, %cst_21 {dimension_numbers = #tpu.dot_dimension_numbers<[1], [0], [0], [1], [0, 0, 1, 1], [], []>} : vector<256x64xbf16>, vector<64x16xbf16>, vector<256x16xf32> -> vector<256x16xf32>
    %c0_22 = arith.constant 0 : index
    %c0_23 = arith.constant 0 : index
    %49 = vector.load %arg7[%c0_22, %c0_23] : memref<1x16xf32, #tpu.memory_space<vmem>>, vector<1x16xf32>
    %50 = vector.broadcast %49 : vector<1x16xf32> to vector<256x16xf32>
    %51 = arith.addf %48, %50 : vector<256x16xf32>
    %52 = vector.shape_cast %51 : vector<256x16xf32> to vector<2x128x16xf32>
    %53 = tpu.transpose %52, [0, 2, 1] : vector<2x128x16xf32> -> vector<2x16x128xf32>
    %54 = arith.addf %0, %53 : vector<2x16x128xf32>
    %55 = vector.shape_cast %54 : vector<2x16x128xf32> to vector<32x128xf32>
    %c0_24 = arith.constant 0 : index
    %c0_25 = arith.constant 0 : index
    %56 = vector.load %arg8[%c0_24, %c0_25] : memref<1x128xf32, #tpu.memory_space<vmem>>, vector<1x128xf32>
    %c0_26 = arith.constant 0 : index
    %c0_27 = arith.constant 0 : index
    %57 = vector.load %arg9[%c0_26, %c0_27] : memref<1x128xf32, #tpu.memory_space<vmem>>, vector<1x128xf32>
    %cst_28 = arith.constant dense<0.000000e+00> : vector<32xf32>
    %58 = vector.multi_reduction <add>, %55, %cst_28 [1] : vector<32x128xf32> to vector<32xf32>
    %59 = vector.shape_cast %58 : vector<32xf32> to vector<32x1xf32>
    %cst_29 = arith.constant 1.280000e+02 : f32
    %60 = vector.broadcast %cst_29 : f32 to vector<32x1xf32>
    %61 = arith.divf %59, %60 : vector<32x1xf32>
    %62 = vector.broadcast %61 : vector<32x1xf32> to vector<32x128xf32>
    %63 = arith.subf %55, %62 : vector<32x128xf32>
    %64 = arith.mulf %63, %63 : vector<32x128xf32>
    %cst_30 = arith.constant dense<0.000000e+00> : vector<32xf32>
    %65 = vector.multi_reduction <add>, %64, %cst_30 [1] : vector<32x128xf32> to vector<32xf32>
    %66 = vector.shape_cast %65 : vector<32xf32> to vector<32x1xf32>
    %cst_31 = arith.constant 1.280000e+02 : f32
    %67 = vector.broadcast %cst_31 : f32 to vector<32x1xf32>
    %68 = arith.divf %66, %67 : vector<32x1xf32>
    %cst_32 = arith.constant 9.99999974E-6 : f32
    %69 = vector.broadcast %cst_32 : f32 to vector<32x1xf32>
    %70 = arith.addf %68, %69 : vector<32x1xf32>
    %71 = math.rsqrt %70 : vector<32x1xf32>
    %72 = vector.broadcast %71 : vector<32x1xf32> to vector<32x128xf32>
    %73 = arith.mulf %63, %72 : vector<32x128xf32>
    %74 = vector.broadcast %56 : vector<1x128xf32> to vector<32x128xf32>
    %75 = arith.mulf %73, %74 : vector<32x128xf32>
    %76 = vector.broadcast %57 : vector<1x128xf32> to vector<32x128xf32>
    %77 = arith.addf %75, %76 : vector<32x128xf32>
    %78 = arith.truncf %77 : vector<32x128xf32> to vector<32x128xbf16>
    %c0_33 = arith.constant 0 : index
    %c0_34 = arith.constant 0 : index
    %79 = vector.load %arg10[%c0_33, %c0_34] : memref<128x256xbf16, #tpu.memory_space<vmem>>, vector<128x256xbf16>
    %cst_35 = arith.constant dense<0.000000e+00> : vector<32x256xf32>
    %80 = tpu.matmul %78, %79, %cst_35 {dimension_numbers = #tpu.dot_dimension_numbers<[1], [0], [0], [1], [0, 0, 1, 1], [], []>} : vector<32x128xbf16>, vector<128x256xbf16>, vector<32x256xf32> -> vector<32x256xf32>
    %c0_36 = arith.constant 0 : index
    %c0_37 = arith.constant 0 : index
    %81 = vector.load %arg11[%c0_36, %c0_37] : memref<1x256xf32, #tpu.memory_space<vmem>>, vector<1x256xf32>
    %82 = vector.broadcast %81 : vector<1x256xf32> to vector<32x256xf32>
    %83 = arith.addf %80, %82 : vector<32x256xf32>
    %cst_38 = arith.constant 5.000000e-01 : f32
    %84 = vector.broadcast %cst_38 : f32 to vector<32x256xf32>
    %85 = arith.mulf %84, %83 : vector<32x256xf32>
    %cst_39 = arith.constant 4.471500e-02 : f32
    %86 = vector.broadcast %cst_39 : f32 to vector<32x256xf32>
    %87 = arith.mulf %86, %83 : vector<32x256xf32>
    %88 = arith.mulf %87, %83 : vector<32x256xf32>
    %89 = arith.mulf %88, %83 : vector<32x256xf32>
    %90 = arith.addf %83, %89 : vector<32x256xf32>
    %cst_40 = arith.constant 0.797884583 : f32
    %91 = vector.broadcast %cst_40 : f32 to vector<32x256xf32>
    %92 = arith.mulf %91, %90 : vector<32x256xf32>
    %93 = math.tanh %92 : vector<32x256xf32>
    %cst_41 = arith.constant 1.000000e+00 : f32
    %94 = vector.broadcast %cst_41 : f32 to vector<32x256xf32>
    %95 = arith.addf %94, %93 : vector<32x256xf32>
    %96 = arith.mulf %85, %95 : vector<32x256xf32>
    %97 = arith.truncf %96 : vector<32x256xf32> to vector<32x256xbf16>
    %c0_42 = arith.constant 0 : index
    %c0_43 = arith.constant 0 : index
    %98 = vector.load %arg12[%c0_42, %c0_43] : memref<256x128xbf16, #tpu.memory_space<vmem>>, vector<256x128xbf16>
    %cst_44 = arith.constant dense<0.000000e+00> : vector<32x128xf32>
    %99 = tpu.matmul %97, %98, %cst_44 {dimension_numbers = #tpu.dot_dimension_numbers<[1], [0], [0], [1], [0, 0, 1, 1], [], []>} : vector<32x256xbf16>, vector<256x128xbf16>, vector<32x128xf32> -> vector<32x128xf32>
    %c0_45 = arith.constant 0 : index
    %c0_46 = arith.constant 0 : index
    %100 = vector.load %arg13[%c0_45, %c0_46] : memref<1x128xf32, #tpu.memory_space<vmem>>, vector<1x128xf32>
    %101 = vector.broadcast %100 : vector<1x128xf32> to vector<32x128xf32>
    %102 = arith.addf %99, %101 : vector<32x128xf32>
    %103 = arith.addf %55, %102 : vector<32x128xf32>
    %104 = vector.shape_cast %103 : vector<32x128xf32> to vector<2x16x128xf32>
    %c0_47 = arith.constant 0 : index
    %c0_48 = arith.constant 0 : index
    %c0_49 = arith.constant 0 : index
    %105 = vector.load %arg14[%c0_47, %c0_48, %c0_49] : memref<2x16x128xf32, #tpu.memory_space<vmem>>, vector<2x16x128xf32>
    tpu.vector_store %arg14[%c0_47, %c0_48, %c0_49], %104 {strides = array<i32>} : memref<2x16x128xf32, #tpu.memory_space<vmem>>, vector<2x16x128xf32>,
    return
  }
  func.func @transform_0(%arg0: i32) -> (i32, i32, i32) {
    %c0_i32 = arith.constant 0 : i32
    %c0_i32_0 = arith.constant 0 : i32
    %c0_i32_1 = arith.constant 0 : i32
    return %arg0, %c0_i32, %c0_i32_0 : i32, i32, i32
  }
  func.func @transform_1(%arg0: i32) -> (i32, i32) {
    %c0_i32 = arith.constant 0 : i32
    %c0_i32_0 = arith.constant 0 : i32
    %c0_i32_1 = arith.constant 0 : i32
    return %c0_i32, %c0_i32_0 : i32, i32
  }
  func.func @transform_2(%arg0: i32) -> (i32, i32) {
    %c0_i32 = arith.constant 0 : i32
    %c0_i32_0 = arith.constant 0 : i32
    %c0_i32_1 = arith.constant 0 : i32
    return %c0_i32, %c0_i32_0 : i32, i32
  }
  func.func @transform_3(%arg0: i32) -> (i32, i32) {
    %c0_i32 = arith.constant 0 : i32
    %c0_i32_0 = arith.constant 0 : i32
    %c0_i32_1 = arith.constant 0 : i32
    return %c0_i32, %c0_i32_0 : i32, i32
  }
  func.func @transform_4(%arg0: i32) -> (i32, i32) {
    %c0_i32 = arith.constant 0 : i32
    %c0_i32_0 = arith.constant 0 : i32
    %c0_i32_1 = arith.constant 0 : i32
    return %c0_i32, %c0_i32_0 : i32, i32
  }
  func.func @transform_5(%arg0: i32) -> (i32, i32) {
    %c0_i32 = arith.constant 0 : i32
    %c0_i32_0 = arith.constant 0 : i32
    %c0_i32_1 = arith.constant 0 : i32
    return %c0_i32, %c0_i32_0 : i32, i32
  }
  func.func @transform_6(%arg0: i32) -> (i32, i32) {
    %c0_i32 = arith.constant 0 : i32
    %c0_i32_0 = arith.constant 0 : i32
    %c0_i32_1 = arith.constant 0 : i32
    return %c0_i32, %c0_i32_0 : i32, i32
  }
  func.func @transform_7(%arg0: i32) -> (i32, i32) {
    %c0_i32 = arith.constant 0 : i32
    %c0_i32_0 = arith.constant 0 : i32
    %c0_i32_1 = arith.constant 0 : i32
    return %c0_i32, %c0_i32_0 : i32, i32
  }
  func.func @transform_8(%arg0: i32) -> (i32, i32) {
    %c0_i32 = arith.constant 0 : i32
    %c0_i32_0 = arith.constant 0 : i32
    %c0_i32_1 = arith.constant 0 : i32
    return %c0_i32, %c0_i32_0 : i32, i32
  }
  func.func @transform_9(%arg0: i32) -> (i32, i32) {
    %c0_i32 = arith.constant 0 : i32
    %c0_i32_0 = arith.constant 0 : i32
    %c0_i32_1 = arith.constant 0 : i32
    return %c0_i32, %c0_i32_0 : i32, i32
  }
  func.func @transform_10(%arg0: i32) -> (i32, i32) {
    %c0_i32 = arith.constant 0 : i32
    %c0_i32_0 = arith.constant 0 : i32
    %c0_i32_1 = arith.constant 0 : i32
    return %c0_i32, %c0_i32_0 : i32, i32
  }
  func.func @transform_11(%arg0: i32) -> (i32, i32) {
    %c0_i32 = arith.constant 0 : i32
    %c0_i32_0 = arith.constant 0 : i32
    %c0_i32_1 = arith.constant 0 : i32
    return %c0_i32, %c0_i32_0 : i32, i32
  }
  func.func @transform_12(%arg0: i32) -> (i32, i32) {
    %c0_i32 = arith.constant 0 : i32
    %c0_i32_0 = arith.constant 0 : i32
    %c0_i32_1 = arith.constant 0 : i32
    return %c0_i32, %c0_i32_0 : i32, i32
  }
  func.func @transform_13(%arg0: i32) -> (i32, i32, i32) {
    %c0_i32 = arith.constant 0 : i32
    %c0_i32_0 = arith.constant 0 : i32
    %c0_i32_1 = arith.constant 0 : i32
    return %arg0, %c0_i32, %c0_i32_0 : i32, i32, i32
  }
}

</mosaic_0001>

<llo_original>
// kernel: tpu_custom_call.1
$region0: #{tpu_custom_call.1}
  #allocation0 [shape = 'u32[]', space=smem, size = 0x4, offset = 0x4, fixed_abs, tag = 'smem constant byte address 0x4 - core index']
  #allocation1 [shape = 'u32[72,128]{1,0:T(1,128)}', space=vmem, size = 0x9000, scoped, tag = 'internal scratch']
  %s0 = inlined_call_operand.hbm [shape: f32[8,16,128], index: 0, kind: input, shape index: {}]
  %s1 = inlined_call_operand.vmem [shape: f32[1,128], index: 1, kind: input, shape index: {}]
  %s2 = inlined_call_operand.vmem [shape: f32[1,128], index: 2, kind: input, shape index: {}]
  %s3 = inlined_call_operand.vmem [shape: bf16[16,64], index: 3, kind: input, shape index: {}]
  %s4 = inlined_call_operand.vmem [shape: f32[1,64], index: 4, kind: input, shape index: {}]
  %s5 = inlined_call_operand.vmem [shape: bf16[64,16], index: 5, kind: input, shape index: {}]
  %s6 = inlined_call_operand.vmem [shape: f32[1,16], index: 6, kind: input, shape index: {}]
  %s7 = inlined_call_operand.vmem [shape: f32[1,128], index: 7, kind: input, shape index: {}]
  %s8 = inlined_call_operand.vmem [shape: f32[1,128], index: 8, kind: input, shape index: {}]
  %s9 = inlined_call_operand.hbm [shape: bf16[128,256], index: 9, kind: input, shape index: {}]
  %s10 = inlined_call_operand.vmem [shape: f32[1,256], index: 10, kind: input, shape index: {}]
  %s11 = inlined_call_operand.hbm [shape: bf16[256,128], index: 11, kind: input, shape index: {}]
  %s12 = inlined_call_operand.vmem [shape: f32[1,128], index: 12, kind: input, shape index: {}]
  %s13 = inlined_call_operand.hbm [shape: f32[8,16,128], index: 13, kind: output, shape index: {}]
  %s14 = sld [smem:[#allocation0]]
  $region97: #{tpu_custom_call.1} parent=0
    _
  %s16 = ssub.s32 1, %s14
  %s17 = scalar_select 0, %s16, %s14
  $region1: #{tpu_custom_call.1} parent=0
    #allocation2 [shape = 'u8[32768]{0}', space=vmem, size = 0x8000, scoped, tag = 'input window, operand 0']
    #allocation3 [shape = 's32[2]{0}', space=sflag, size = 0x8, scoped, tag = 'scoped memory for tpu_custom_call.1']
    #allocation4 [shape = 's32[2]{0}', space=sflag, size = 0x8, scoped, tag = 'scoped memory for tpu_custom_call.1']
    #allocation5 [shape = 'u8[65536]{0}', space=vmem, size = 0x10000, scoped, tag = 'input window, operand 9, single buffered']
    #allocation6 [shape = 's32[1]{0}', space=sflag, size = 0x4, scoped, tag = 'scoped memory for tpu_custom_call.1']
    #allocation7 [shape = 'u8[65536]{0}', space=vmem, size = 0x10000, scoped, tag = 'input window, operand 11, single buffered']
    #allocation8 [shape = 'u8[32768]{0}', space=vmem, size = 0x8000, scoped, tag = 'output window, operand 0']
    %18 = vsyncpa [#allocation3], 0
    %s19 = scalar_lea.sflag [#allocation3], 1
    %20 = vsyncpa %s19, 0
    %21 = vsyncpa [#allocation6], 0
    %22 = vsyncpa [#allocation4], 0
    %s23 = scalar_lea.sflag [#allocation4], 1
    %24 = vsyncpa %s23, 0
    loop: start=0, step=1, limit=6
    $region2: #{tpu_custom_call.1} parent=1 // loop_pre_header
      _
    $region3: #{tpu_custom_call.1} parent=1 // loop_header
      %s26 = sphi 0, %s30
      %p27 = scmp.ge.s32.totalorder %s26, 6
      %s36 = sphi 0, %s38
      %s39 = sphi 0, %s36
      %s40 = sphi 0, %s39
      %s56 = sphi 0, %s40
      %s60 = sphi 0, %s60
      %s62 = sphi 0, %s60
      %s63 = sphi 0, %s62
      %s77 = sphi 0, %s63
      %s81 = sphi 0, %s81
      %s83 = sphi 0, %s81
      %s84 = sphi 0, %s83
      %s98 = sphi 0, %s84
      %s102 = sphi 0, %s102
      %s104 = sphi 0, %s102
      %s105 = sphi 0, %s104
      %s119 = sphi 0, %s105
      %s123 = sphi 0, %s123
      %s125 = sphi 0, %s123
      %s126 = sphi 0, %s125
      %s140 = sphi 0, %s126
      %s144 = sphi 0, %s144
      %s146 = sphi 0, %s144
      %s147 = sphi 0, %s146
      %s161 = sphi 0, %s147
      %s165 = sphi 0, %s165
      %s167 = sphi 0, %s165
      %s168 = sphi 0, %s167
      %s182 = sphi 0, %s168
      %s186 = sphi 0, %s186
      %s188 = sphi 0, %s186
      %s189 = sphi 0, %s188
      %s203 = sphi 0, %s189
      %s207 = sphi 0, %s207
      %s209 = sphi 0, %s207
      %s210 = sphi 0, %s209
      %s224 = sphi 0, %s210
      %s228 = sphi 0, %s228
      %s230 = sphi 0, %s228
      %s231 = sphi 0, %s230
      %s245 = sphi 0, %s231
      %s249 = sphi 0, %s249
      %s251 = sphi 0, %s249
      %s252 = sphi 0, %s251
      %s266 = sphi 0, %s252
      %s270 = sphi 0, %s270
      %s272 = sphi 0, %s270
      %s273 = sphi 0, %s272
      %s287 = sphi 0, %s273
      %s291 = sphi 0, %s291
      %s293 = sphi 0, %s291
      %s294 = sphi 0, %s293
      %s308 = sphi 0, %s294
      %s314 = sphi 0, %s316
      %s317 = sphi 0, %s314
      %s318 = sphi 0, %s317
      %s334 = sphi 0, %s318
    $region4: #{tpu_custom_call.1} parent=1 // loop_header_branch
      %29 = sbr.rel (%p27) target = $region8
    $region5: #{tpu_custom_call.1} parent=1 // loop_body
      %s31 = ssub.s32 %s26, 1
      %s32 = ssub.s32 %s26, 2
      %s33 = sadd.s32 %s26, 1
      %s34 = ssub.s32 %s26, %s33
      %p35 = scmp.eq.s32.totalorder %s34, 0
      %s37 = sadd.s32 %s36, 1
      %s38 = scalar_select %p35, %s36, %s37
      %p41 = pneg %p35
      %p42 = scmp.eq.s32.totalorder %s26, 3
      %p43 = por %p41, %p42
      %p44 = scmp.ne.s32.totalorder %s36, %s39
      %p45 = scmp.eq.s32.totalorder %s26, 0
      %p46 = por %p44, %p45
      %p47 = scmp.ne.s32.totalorder %s36, %s39
      %p48 = scmp.eq.s32.totalorder %s31, 3
      %p49 = por %p47, %p48
      %p50 = scmp.ne.s32.totalorder %s39, %s40
      %p51 = scmp.eq.s32.totalorder %s31, 0
      %p52 = por %p50, %p51
      %p53 = scmp.ne.s32.totalorder %s39, %s40
      %p54 = scmp.eq.s32.totalorder %s32, 3
      %p55 = por %p53, %p54
      %p57 = scmp.ne.s32.totalorder %s40, %s56
      %p58 = scmp.eq.s32.totalorder %s32, 0
      %p59 = por %p57, %p58
      %s61 = sadd.s32 %s60, 1
      %p64 = scmp.eq.s32.totalorder %s26, 3
      %p65 = scmp.ne.s32.totalorder %s60, %s62
      %p66 = scmp.eq.s32.totalorder %s26, 0
      %p67 = por %p65, %p66
      %p68 = scmp.ne.s32.totalorder %s60, %s62
      %p69 = scmp.eq.s32.totalorder %s31, 3
      %p70 = por %p68, %p69
      %p71 = scmp.ne.s32.totalorder %s62, %s63
      %p72 = scmp.eq.s32.totalorder %s31, 0
      %p73 = por %p71, %p72
      %p74 = scmp.ne.s32.totalorder %s62, %s63
      %p75 = scmp.eq.s32.totalorder %s32, 3
      %p76 = por %p74, %p75
      %p78 = scmp.ne.s32.totalorder %s63, %s77
      %p79 = scmp.eq.s32.totalorder %s32, 0
      %p80 = por %p78, %p79
      %s82 = sadd.s32 %s81, 1
      %p85 = scmp.eq.s32.totalorder %s26, 3
      %p86 = scmp.ne.s32.totalorder %s81, %s83
      %p87 = scmp.eq.s32.totalorder %s26, 0
      %p88 = por %p86, %p87
      %p89 = scmp.ne.s32.totalorder %s81, %s83
      %p90 = scmp.eq.s32.totalorder %s31, 3
      %p91 = por %p89, %p90
      %p92 = scmp.ne.s32.totalorder %s83, %s84
      %p93 = scmp.eq.s32.totalorder %s31, 0
      %p94 = por %p92, %p93
      %p95 = scmp.ne.s32.totalorder %s83, %s84
      %p96 = scmp.eq.s32.totalorder %s32, 3
      %p97 = por %p95, %p96
      %p99 = scmp.ne.s32.totalorder %s84, %s98
      %p100 = scmp.eq.s32.totalorder %s32, 0
      %p101 = por %p99, %p100
      %s103 = sadd.s32 %s102, 1
      %p106 = scmp.eq.s32.totalorder %s26, 3
      %p107 = scmp.ne.s32.totalorder %s102, %s104
      %p108 = scmp.eq.s32.totalorder %s26, 0
      %p109 = por %p107, %p108
      %p110 = scmp.ne.s32.totalorder %s102, %s104
      %p111 = scmp.eq.s32.totalorder %s31, 3
      %p112 = por %p110, %p111
      %p113 = scmp.ne.s32.totalorder %s104, %s105
      %p114 = scmp.eq.s32.totalorder %s31, 0
      %p115 = por %p113, %p114
      %p116 = scmp.ne.s32.totalorder %s104, %s105
      %p117 = scmp.eq.s32.totalorder %s32, 3
      %p118 = por %p116, %p117
      %p120 = scmp.ne.s32.totalorder %s105, %s119
      %p121 = scmp.eq.s32.totalorder %s32, 0
      %p122 = por %p120, %p121
      %s124 = sadd.s32 %s123, 1
      %p127 = scmp.eq.s32.totalorder %s26, 3
      %p128 = scmp.ne.s32.totalorder %s123, %s125
      %p129 = scmp.eq.s32.totalorder %s26, 0
      %p130 = por %p128, %p129
      %p131 = scmp.ne.s32.totalorder %s123, %s125
      %p132 = scmp.eq.s32.totalorder %s31, 3
      %p133 = por %p131, %p132
      %p134 = scmp.ne.s32.totalorder %s125, %s126
      %p135 = scmp.eq.s32.totalorder %s31, 0
      %p136 = por %p134, %p135
      %p137 = scmp.ne.s32.totalorder %s125, %s126
      %p138 = scmp.eq.s32.totalorder %s32, 3
      %p139 = por %p137, %p138
      %p141 = scmp.ne.s32.totalorder %s126, %s140
      %p142 = scmp.eq.s32.totalorder %s32, 0
      %p143 = por %p141, %p142
      %s145 = sadd.s32 %s144, 1
      %p148 = scmp.eq.s32.totalorder %s26, 3
      %p149 = scmp.ne.s32.totalorder %s144, %s146
      %p150 = scmp.eq.s32.totalorder %s26, 0
      %p151 = por %p149, %p150
      %p152 = scmp.ne.s32.totalorder %s144, %s146
      %p153 = scmp.eq.s32.totalorder %s31, 3
      %p154 = por %p152, %p153
      %p155 = scmp.ne.s32.totalorder %s146, %s147
      %p156 = scmp.eq.s32.totalorder %s31, 0
      %p157 = por %p155, %p156
      %p158 = scmp.ne.s32.totalorder %s146, %s147
      %p159 = scmp.eq.s32.totalorder %s32, 3
      %p160 = por %p158, %p159
      %p162 = scmp.ne.s32.totalorder %s147, %s161
      %p163 = scmp.eq.s32.totalorder %s32, 0
      %p164 = por %p162, %p163
      %s166 = sadd.s32 %s165, 1
      %p169 = scmp.eq.s32.totalorder %s26, 3
      %p170 = scmp.ne.s32.totalorder %s165, %s167
      %p171 = scmp.eq.s32.totalorder %s26, 0
      %p172 = por %p170, %p171
      %p173 = scmp.ne.s32.totalorder %s165, %s167
      %p174 = scmp.eq.s32.totalorder %s31, 3
      %p175 = por %p173, %p174
      %p176 = scmp.ne.s32.totalorder %s167, %s168
      %p177 = scmp.eq.s32.totalorder %s31, 0
      %p178 = por %p176, %p177
      %p179 = scmp.ne.s32.totalorder %s167, %s168
      %p180 = scmp.eq.s32.totalorder %s32, 3
      %p181 = por %p179, %p180
      %p183 = scmp.ne.s32.totalorder %s168, %s182
      %p184 = scmp.eq.s32.totalorder %s32, 0
      %p185 = por %p183, %p184
      %s187 = sadd.s32 %s186, 1
      %p190 = scmp.eq.s32.totalorder %s26, 3
      %p191 = scmp.ne.s32.totalorder %s186, %s188
      %p192 = scmp.eq.s32.totalorder %s26, 0
      %p193 = por %p191, %p192
      %p194 = scmp.ne.s32.totalorder %s186, %s188
      %p195 = scmp.eq.s32.totalorder %s31, 3
      %p196 = por %p194, %p195
      %p197 = scmp.ne.s32.totalorder %s188, %s189
      %p198 = scmp.eq.s32.totalorder %s31, 0
      %p199 = por %p197, %p198
      %p200 = scmp.ne.s32.totalorder %s188, %s189
      %p201 = scmp.eq.s32.totalorder %s32, 3
      %p202 = por %p200, %p201
      %p204 = scmp.ne.s32.totalorder %s189, %s203
      %p205 = scmp.eq.s32.totalorder %s32, 0
      %p206 = por %p204, %p205
      %s208 = sadd.s32 %s207, 1
      %p211 = scmp.eq.s32.totalorder %s26, 3
      %p212 = scmp.ne.s32.totalorder %s207, %s209
      %p213 = scmp.eq.s32.totalorder %s26, 0
      %p214 = por %p212, %p213
      %p215 = scmp.ne.s32.totalorder %s207, %s209
      %p216 = scmp.eq.s32.totalorder %s31, 3
      %p217 = por %p215, %p216
      %p218 = scmp.ne.s32.totalorder %s209, %s210
      %p219 = scmp.eq.s32.totalorder %s31, 0
      %p220 = por %p218, %p219
      %p221 = scmp.ne.s32.totalorder %s209, %s210
      %p222 = scmp.eq.s32.totalorder %s32, 3
      %p223 = por %p221, %p222
      %p225 = scmp.ne.s32.totalorder %s210, %s224
      %p226 = scmp.eq.s32.totalorder %s32, 0
      %p227 = por %p225, %p226
      %s229 = sadd.s32 %s228, 1
      %p232 = scmp.eq.s32.totalorder %s26, 3
      %p233 = scmp.ne.s32.totalorder %s228, %s230
      %p234 = scmp.eq.s32.totalorder %s26, 0
      %p235 = por %p233, %p234
      %p236 = scmp.ne.s32.totalorder %s228, %s230
      %p237 = scmp.eq.s32.totalorder %s31, 3
      %p238 = por %p236, %p237
      %p239 = scmp.ne.s32.totalorder %s230, %s231
      %p240 = scmp.eq.s32.totalorder %s31, 0
      %p241 = por %p239, %p240
      %p242 = scmp.ne.s32.totalorder %s230, %s231
      %p243 = scmp.eq.s32.totalorder %s32, 3
      %p244 = por %p242, %p243
      %p246 = scmp.ne.s32.totalorder %s231, %s245
      %p247 = scmp.eq.s32.totalorder %s32, 0
      %p248 = por %p246, %p247
      %s250 = sadd.s32 %s249, 1
      %p253 = scmp.eq.s32.totalorder %s26, 3
      %p254 = scmp.ne.s32.totalorder %s249, %s251
      %p255 = scmp.eq.s32.totalorder %s26, 0
      %p256 = por %p254, %p255
      %p257 = scmp.ne.s32.totalorder %s249, %s251
      %p258 = scmp.eq.s32.totalorder %s31, 3
      %p259 = por %p257, %p258
      %p260 = scmp.ne.s32.totalorder %s251, %s252
      %p261 = scmp.eq.s32.totalorder %s31, 0
      %p262 = por %p260, %p261
      %p263 = scmp.ne.s32.totalorder %s251, %s252
      %p264 = scmp.eq.s32.totalorder %s32, 3
      %p265 = por %p263, %p264
      %p267 = scmp.ne.s32.totalorder %s252, %s266
      %p268 = scmp.eq.s32.totalorder %s32, 0
      %p269 = por %p267, %p268
      %s271 = sadd.s32 %s270, 1
      %p274 = scmp.eq.s32.totalorder %s26, 3
      %p275 = scmp.ne.s32.totalorder %s270, %s272
      %p276 = scmp.eq.s32.totalorder %s26, 0
      %p277 = por %p275, %p276
      %p278 = scmp.ne.s32.totalorder %s270, %s272
      %p279 = scmp.eq.s32.totalorder %s31, 3
      %p280 = por %p278, %p279
      %p281 = scmp.ne.s32.totalorder %s272, %s273
      %p282 = scmp.eq.s32.totalorder %s31, 0
      %p283 = por %p281, %p282
      %p284 = scmp.ne.s32.totalorder %s272, %s273
      %p285 = scmp.eq.s32.totalorder %s32, 3
      %p286 = por %p284, %p285
      %p288 = scmp.ne.s32.totalorder %s273, %s287
      %p289 = scmp.eq.s32.totalorder %s32, 0
      %p290 = por %p288, %p289
      %s292 = sadd.s32 %s291, 1
      %p295 = scmp.eq.s32.totalorder %s26, 3
      %p296 = scmp.ne.s32.totalorder %s291, %s293
      %p297 = scmp.eq.s32.totalorder %s26, 0
      %p298 = por %p296, %p297
      %p299 = scmp.ne.s32.totalorder %s291, %s293
      %p300 = scmp.eq.s32.totalorder %s31, 3
      %p301 = por %p299, %p300
      %p302 = scmp.ne.s32.totalorder %s293, %s294
      %p303 = scmp.eq.s32.totalorder %s31, 0
      %p304 = por %p302, %p303
      %p305 = scmp.ne.s32.totalorder %s293, %s294
      %p306 = scmp.eq.s32.totalorder %s32, 3
      %p307 = por %p305, %p306
      %p309 = scmp.ne.s32.totalorder %s294, %s308
      %p310 = scmp.eq.s32.totalorder %s32, 0
      %p311 = por %p309, %p310
      %s312 = ssub.s32 %s26, %s33
      %p313 = scmp.eq.s32.totalorder %s312, 0
      %s315 = sadd.s32 %s314, 1
      %s316 = scalar_select %p313, %s314, %s315
      %p319 = pneg %p313
      %p320 = scmp.eq.s32.totalorder %s26, 3
      %p321 = por %p319, %p320
      %p322 = scmp.ne.s32.totalorder %s314, %s317
      %p323 = scmp.eq.s32.totalorder %s26, 0
      %p324 = por %p322, %p323
      %p325 = scmp.ne.s32.totalorder %s314, %s317
      %p326 = scmp.eq.s32.totalorder %s31, 3
      %p327 = por %p325, %p326
      %p328 = scmp.ne.s32.totalorder %s317, %s318
      %p329 = scmp.eq.s32.totalorder %s31, 0
      %p330 = por %p328, %p329
      %p331 = scmp.ne.s32.totalorder %s317, %s318
      %p332 = scmp.eq.s32.totalorder %s32, 3
      %p333 = por %p331, %p332
      %p335 = scmp.ne.s32.totalorder %s318, %s334
      %p336 = scmp.eq.s32.totalorder %s32, 0
      %p337 = por %p335, %p336
      %p338 = scmp.le.s32.totalorder 1, %s26
      %p339 = scmp.lt.s32.totalorder %s26, 5
      %p340 = pnand %p338, %p339
      %p341 = pneg %p340
      // Predicated region
      $region9: #{tpu_custom_call.1} parent=5 // pred_check
        _
      $region10: #{tpu_custom_call.1} parent=5 // pred_check_branch
        %343 = sbr.rel (%p340) target = $region12
      $region11: #{tpu_custom_call.1} parent=5 // pred_region
        %s344 = ssub.s32 %s26, 1
        // Predicated region
        $region13: #{tpu_custom_call.1} parent=11 // pred_check
          %p345 = pneg %p73
        $region14: #{tpu_custom_call.1} parent=11 // pred_check_branch
          %347 = sbr.rel (%p345) target = $region16
        $region15: #{tpu_custom_call.1} parent=11 // pred_region
          _
        $region16: #{tpu_custom_call.1} parent=11 // pred_fallthru
          _
        // Predicated region
        $region17: #{tpu_custom_call.1} parent=11 // pred_check
          %p348 = pneg %p94
        $region18: #{tpu_custom_call.1} parent=11 // pred_check_branch
          %350 = sbr.rel (%p348) target = $region20
        $region19: #{tpu_custom_call.1} parent=11 // pred_region
          _
        $region20: #{tpu_custom_call.1} parent=11 // pred_fallthru
          _
        // Predicated region
        $region21: #{tpu_custom_call.1} parent=11 // pred_check
          %p351 = pneg %p115
        $region22: #{tpu_custom_call.1} parent=11 // pred_check_branch
          %353 = sbr.rel (%p351) target = $region24
        $region23: #{tpu_custom_call.1} parent=11 // pred_region
          _
        $region24: #{tpu_custom_call.1} parent=11 // pred_fallthru
          _
        // Predicated region
        $region25: #{tpu_custom_call.1} parent=11 // pred_check
          %p354 = pneg %p136
        $region26: #{tpu_custom_call.1} parent=11 // pred_check_branch
          %356 = sbr.rel (%p354) target = $region28
        $region27: #{tpu_custom_call.1} parent=11 // pred_region
          _
        $region28: #{tpu_custom_call.1} parent=11 // pred_fallthru
          _
        // Predicated region
        $region29: #{tpu_custom_call.1} parent=11 // pred_check
          %p357 = pneg %p157
        $region30: #{tpu_custom_call.1} parent=11 // pred_check_branch
          %359 = sbr.rel (%p357) target = $region32
        $region31: #{tpu_custom_call.1} parent=11 // pred_region
          _
        $region32: #{tpu_custom_call.1} parent=11 // pred_fallthru
          _
        // Predicated region
        $region33: #{tpu_custom_call.1} parent=11 // pred_check
          %p360 = pneg %p178
        $region34: #{tpu_custom_call.1} parent=11 // pred_check_branch
          %362 = sbr.rel (%p360) target = $region36
        $region35: #{tpu_custom_call.1} parent=11 // pred_region
          _
        $region36: #{tpu_custom_call.1} parent=11 // pred_fallthru
          _
        // Predicated region
        $region37: #{tpu_custom_call.1} parent=11 // pred_check
          %p363 = pneg %p199
        $region38: #{tpu_custom_call.1} parent=11 // pred_check_branch
          %365 = sbr.rel (%p363) target = $region40
        $region39: #{tpu_custom_call.1} parent=11 // pred_region
          _
        $region40: #{tpu_custom_call.1} parent=11 // pred_fallthru
          _
        // Predicated region
        $region41: #{tpu_custom_call.1} parent=11 // pred_check
          %p366 = pneg %p220
        $region42: #{tpu_custom_call.1} parent=11 // pred_check_branch
          %368 = sbr.rel (%p366) target = $region44
        $region43: #{tpu_custom_call.1} parent=11 // pred_region
          _
        $region44: #{tpu_custom_call.1} parent=11 // pred_fallthru
          _
        // Predicated region
        $region45: #{tpu_custom_call.1} parent=11 // pred_check
          %p369 = pneg %p241
        $region46: #{tpu_custom_call.1} parent=11 // pred_check_branch
          %371 = sbr.rel (%p369) target = $region48
        $region47: #{tpu_custom_call.1} parent=11 // pred_region
          %373 = vsyncadd [#allocation6], 0
          %s374 = sshll.u32 %s9, 4
          %s375 = int_to_ptr.hbm [resolvable:$true] %s374
          %s376 = sshll.u32 [#allocation5], 4
          %s377 = int_to_ptr.vmem [resolvable:$true] %s376
          %382 = dma.hbm_to_vmem [thread:$0]  %s375, 2048, %s377, [#allocation6], 128, 128, 8
        $region48: #{tpu_custom_call.1} parent=11 // pred_fallthru
          _
        // Predicated region
        $region49: #{tpu_custom_call.1} parent=11 // pred_check
          %p383 = pneg %p262
        $region50: #{tpu_custom_call.1} parent=11 // pred_check_branch
          %385 = sbr.rel (%p383) target = $region52
        $region51: #{tpu_custom_call.1} parent=11 // pred_region
          _
        $region52: #{tpu_custom_call.1} parent=11 // pred_fallthru
          _
        // Predicated region
        $region53: #{tpu_custom_call.1} parent=11 // pred_check
          %p386 = pneg %p283
        $region54: #{tpu_custom_call.1} parent=11 // pred_check_branch
          %388 = sbr.rel (%p386) target = $region56
        $region55: #{tpu_custom_call.1} parent=11 // pred_region
          %390 = vsyncadd [#allocation6], 0
          %s391 = sshll.u32 %s11, 4
          %s392 = int_to_ptr.hbm [resolvable:$true] %s391
          %s393 = sshll.u32 [#allocation7], 4
          %s394 = int_to_ptr.vmem [resolvable:$true] %s393
          %399 = dma.hbm_to_vmem [thread:$0]  %s392, 2048, %s394, [#allocation6], 64, 64, 4
        $region56: #{tpu_custom_call.1} parent=11 // pred_fallthru
          _
        // Predicated region
        $region57: #{tpu_custom_call.1} parent=11 // pred_check
          %p400 = pneg %p304
        $region58: #{tpu_custom_call.1} parent=11 // pred_check_branch
          %402 = sbr.rel (%p400) target = $region60
        $region59: #{tpu_custom_call.1} parent=11 // pred_region
          _
        $region60: #{tpu_custom_call.1} parent=11 // pred_fallthru
          _
      $region12: #{tpu_custom_call.1} parent=5 // pred_fallthru
        _
      %p403 = scmp.lt.s32.totalorder %s26, 4
      // Predicated region
      $region61: #{tpu_custom_call.1} parent=5 // pred_check
        %p404 = pneg %p403
      $region62: #{tpu_custom_call.1} parent=5 // pred_check_branch
        %406 = sbr.rel (%p404) target = $region64
      $region63: #{tpu_custom_call.1} parent=5 // pred_region
        // Predicated region
        $region65: #{tpu_custom_call.1} parent=63 // pred_check
          %p407 = pneg %p46
        $region66: #{tpu_custom_call.1} parent=63 // pred_check_branch
          %409 = sbr.rel (%p407) target = $region68
        $region67: #{tpu_custom_call.1} parent=63 // pred_region
          %s410 = sand.u32 %s36, 1
          %s411 = scalar_lea.sflag [#allocation3], %s410
          %s412 = sand.u32 %s36, 1
          %s413 = smul.addr %s412, 32
          %s414 = scalar_lea.vmem [#allocation2], %s413
          %s415 = smul.u32 2, %s26
          %417 = vsyncadd %s411, 0
          %s418 = smul.addr %s415, 2
          %s419 = smul.addr %s418, 8
          %s420 = scalar_lea.hbm %s0, %s419
          %s421 = sshll.u32 %s420, 4
          %s422 = int_to_ptr.hbm [resolvable:$true] %s421
          %s423 = sshll.u32 %s414, 4
          %s424 = int_to_ptr.vmem [resolvable:$true] %s423
          %429 = dma.hbm_to_vmem [thread:$0]  %s422, 512, %s424, %s411, 128, 128, 8
        $region68: #{tpu_custom_call.1} parent=63 // pred_fallthru
          _
      $region64: #{tpu_custom_call.1} parent=5 // pred_fallthru
        _
      %p430 = scmp.le.s32.totalorder 1, %s26
      %p431 = scmp.lt.s32.totalorder %s26, 5
      %p432 = pnand %p430, %p431
      %p433 = pneg %p432
      // Predicated region
      $region69: #{tpu_custom_call.1} parent=5 // pred_check
        _
      $region70: #{tpu_custom_call.1} parent=5 // pred_check_branch
        %435 = sbr.rel (%p432) target = $region72
      $region71: #{tpu_custom_call.1} parent=5 // pred_region
        %s436 = ssub.s32 %s26, 1
        %s437 = sand.u32 %s39, 1
        %s438 = scalar_lea.sflag [#allocation3], %s437
        %s439 = sand.u32 %s39, 1
        %s440 = smul.addr %s439, 32
        %s441 = scalar_lea.vmem [#allocation2], %s440
        // Predicated region
        $region73: #{tpu_custom_call.1} parent=71 // pred_check
          %p442 = pneg %p52
        $region74: #{tpu_custom_call.1} parent=71 // pred_check_branch
          %444 = sbr.rel (%p442) target = $region76
        $region75: #{tpu_custom_call.1} parent=71 // pred_region
          %446 = dma.done %s438, 512
        $region76: #{tpu_custom_call.1} parent=71 // pred_fallthru
          _
        // Predicated region
        $region77: #{tpu_custom_call.1} parent=71 // pred_check
          %p447 = pneg %p241
        $region78: #{tpu_custom_call.1} parent=71 // pred_check_branch
          %449 = sbr.rel (%p447) target = $region80
        $region79: #{tpu_custom_call.1} parent=71 // pred_region
          %451 = dma.done [#allocation6], 2048
        $region80: #{tpu_custom_call.1} parent=71 // pred_fallthru
          _
        // Predicated region
        $region81: #{tpu_custom_call.1} parent=71 // pred_check
          %p452 = pneg %p283
        $region82: #{tpu_custom_call.1} parent=71 // pred_check_branch
          %454 = sbr.rel (%p452) target = $region84
        $region83: #{tpu_custom_call.1} parent=71 // pred_region
          %456 = dma.done [#allocation6], 2048
        $region84: #{tpu_custom_call.1} parent=71 // pred_fallthru
          _
        %s457 = sand.u32 %s39, 1
        %s458 = scalar_lea.sflag [#allocation3], %s457
        %s459 = sand.u32 %s39, 1
        %s460 = smul.addr %s459, 32
        %s461 = scalar_lea.vmem [#allocation2], %s460
        %p462 = pneg %p52
        %p463 = pneg %p49
        %p464 = pneg %p73
        %p465 = pneg %p70
        %p466 = pneg %p94
        %p467 = pneg %p91
        %p468 = pneg %p115
        %p469 = pneg %p112
        %p470 = pneg %p136
        %p471 = pneg %p133
        %p472 = pneg %p157
        %p473 = pneg %p154
        %p474 = pneg %p178
        %p475 = pneg %p175
        %p476 = pneg %p199
        %p477 = pneg %p196
        %p478 = pneg %p220
        %p479 = pneg %p217
        %p480 = pneg %p241
        %p481 = pneg %p238
        %p482 = pneg %p262
        %p483 = pneg %p259
        %p484 = pneg %p283
        %p485 = pneg %p280
        %p486 = pneg %p304
        %p487 = pneg %p301
        %p488 = pneg %p330
        %p489 = pneg %p327
        %s490 = sand.u32 %s317, 1
        %s491 = scalar_lea.sflag [#allocation4], %s490
        %s492 = sand.u32 %s317, 1
        %s493 = smul.addr %s492, 32
        %s494 = scalar_lea.vmem [#allocation8], %s493
        %s495 = smul.u32 2, %s31
        %s496 = smul.u32 2, %s31
        %v498 = vld [vmem:[%s441] sm:$0xff]
        %v499 = vld [vmem:[%s441 + $0x8] sm:$0xff]
        %v500 = vld [vmem:[%s441 + $0x10] sm:$0xff]
        %v501 = vld [vmem:[%s441 + $0x18] sm:$0xff]
        %v502 = vld [vmem:[%s1] sm:$0x1]
        %v503 = vld [vmem:[%s2] sm:$0x1]
        %504 = vadd.xlane.f32.xlu0 %v498
        %v505 = vpop.xlane.xlu0 %504
        %506 = vadd.xlane.f32.xlu0 %v499
        %v507 = vpop.xlane.xlu0 %506
        %508 = vadd.xlane.f32.xlu0 %v500
        %v509 = vpop.xlane.xlu0 %508
        %510 = vadd.xlane.f32.xlu0 %v501
        %v511 = vpop.xlane.xlu0 %510
        %v512 = vrcp.pop 128.0
        %v513 = vmul.f32 128.0, %v512
        %v514 = vsub.f32 1.0, %v513
        %v515 = vmul.f32 %v512, %v514
        %v516 = vadd.f32 %v512, %v515
        %vm517 = vweird.f32 %v512
        %v518 = vsel %vm517, %v512, %v516
        %v519 = vmul.f32 %v505, %v518
        %v520 = vmul.f32 %v507, %v518
        %v521 = vmul.f32 %v509, %v518
        %v522 = vmul.f32 %v511, %v518
        %v523 = vsub.f32 %v498, %v519
        %v524 = vsub.f32 %v499, %v520
        %v525 = vsub.f32 %v500, %v521
        %v526 = vsub.f32 %v501, %v522
        %v527 = vmul.f32 %v523, %v523
        %v528 = vmul.f32 %v524, %v524
        %v529 = vmul.f32 %v525, %v525
        %v530 = vmul.f32 %v526, %v526
        %531 = vadd.xlane.f32.xlu0 %v527
        %v532 = vpop.xlane.xlu0 %531
        %533 = vadd.xlane.f32.xlu0 %v528
        %v534 = vpop.xlane.xlu0 %533
        %535 = vadd.xlane.f32.xlu0 %v529
        %v536 = vpop.xlane.xlu0 %535
        %537 = vadd.xlane.f32.xlu0 %v530
        %v538 = vpop.xlane.xlu0 %537
        %v539 = vmul.f32 %v532, %v518
        %v540 = vmul.f32 %v534, %v518
        %v541 = vmul.f32 %v536, %v518
        %v542 = vmul.f32 %v538, %v518
        %v543 = vadd.f32 %v539, 1e-05
        %v544 = vadd.f32 %v540, 1e-05
        %v545 = vadd.f32 %v541, 1e-05
        %v546 = vadd.f32 %v542, 1e-05
        %v547 = vrsqrt.pop %v543
        %v548 = vmul.f32 %v547, %v543
        %v549 = vmul.f32 %v548, %v547
        %v550 = vmul.f32 0.5, %v549
        %v551 = vsub.f32 1.5, %v550
        %v552 = vmul.f32 %v547, %v551
        %vm553 = vweird.f32 %v543
        %vm554 = vweird.f32 %v547
        %vm555 = vmor %vm553, %vm554
        %v556 = vsel %vm555, %v547, %v552
        %v557 = vrsqrt.pop %v544
        %v558 = vmul.f32 %v557, %v544
        %v559 = vmul.f32 %v558, %v557
        %v560 = vmul.f32 0.5, %v559
        %v561 = vsub.f32 1.5, %v560
        %v562 = vmul.f32 %v557, %v561
        %vm563 = vweird.f32 %v544
        %vm564 = vweird.f32 %v557
        %vm565 = vmor %vm563, %vm564
        %v566 = vsel %vm565, %v557, %v562
        %v567 = vrsqrt.pop %v545
        %v568 = vmul.f32 %v567, %v545
        %v569 = vmul.f32 %v568, %v567
        %v570 = vmul.f32 0.5, %v569
        %v571 = vsub.f32 1.5, %v570
        %v572 = vmul.f32 %v567, %v571
        %vm573 = vweird.f32 %v545
        %vm574 = vweird.f32 %v567
        %vm575 = vmor %vm573, %vm574
        %v576 = vsel %vm575, %v567, %v572
        %v577 = vrsqrt.pop %v546
        %v578 = vmul.f32 %v577, %v546
        %v579 = vmul.f32 %v578, %v577
        %v580 = vmul.f32 0.5, %v579
        %v581 = vsub.f32 1.5, %v580
        %v582 = vmul.f32 %v577, %v581
        %vm583 = vweird.f32 %v546
        %vm584 = vweird.f32 %v577
        %vm585 = vmor %vm583, %vm584
        %v586 = vsel %vm585, %v577, %v582
        %v587 = vmul.f32 %v523, %v556
        %v588 = vmul.f32 %v524, %v566
        %v589 = vmul.f32 %v525, %v576
        %v590 = vmul.f32 %v526, %v586
        %v592 = vperm.slane %v502, 0
        %v594 = vmul.f32 %v587, %v592
        %v595 = vmul.f32 %v588, %v592
        %v596 = vmul.f32 %v589, %v592
        %v597 = vmul.f32 %v590, %v592
        %v599 = vperm.slane %v503, 0
        %v601 = vadd.f32 %v594, %v599
        %v602 = vadd.f32 %v595, %v599
        %v603 = vadd.f32 %v596, %v599
        %v604 = vadd.f32 %v597, %v599
        %605 = vxpose.xlu0.b32.start [1/16] %v601, 128
        %606 = vxpose.xlu0.b32.cont [2/16] %v602, 128
        %607 = vxpose.xlu0.b32.cont [3/16] 0.0, 128
        %608 = vxpose.xlu0.b32.cont [4/16] 0.0, 128
        %609 = vxpose.xlu0.b32.cont [5/16] 0.0, 128
        %610 = vxpose.xlu0.b32.cont [6/16] 0.0, 128
        %611 = vxpose.xlu0.b32.cont [7/16] 0.0, 128
        %612 = vxpose.xlu0.b32.cont [8/16] 0.0, 128
        %613 = vxpose.xlu0.b32.cont [9/16] 0.0, 128
        %614 = vxpose.xlu0.b32.cont [10/16] 0.0, 128
        %615 = vxpose.xlu0.b32.cont [11/16] 0.0, 128
        %616 = vxpose.xlu0.b32.cont [12/16] 0.0, 128
        %617 = vxpose.xlu0.b32.cont [13/16] 0.0, 128
        %618 = vxpose.xlu0.b32.cont [14/16] 0.0, 128
        %619 = vxpose.xlu0.b32.cont [15/16] 0.0, 128
        %620 = vxpose.xlu0.b32.end [16/16] 0.0, 128
        %v621 = vpop.trf.xlu0
        %v622 = vpop.trf.xlu0
        %v623 = vpop.trf.xlu0
        %v624 = vpop.trf.xlu0
        %v625 = vpop.trf.xlu0
        %v626 = vpop.trf.xlu0
        %v627 = vpop.trf.xlu0
        %v628 = vpop.trf.xlu0
        %v629 = vpop.trf.xlu0
        %v630 = vpop.trf.xlu0
        %v631 = vpop.trf.xlu0
        %v632 = vpop.trf.xlu0
        %v633 = vpop.trf.xlu0
        %v634 = vpop.trf.xlu0
        %v635 = vpop.trf.xlu0
        %v636 = vpop.trf.xlu0
        %637 = vxpose.xlu0.b32.start [1/16] %v603, 128
        %638 = vxpose.xlu0.b32.cont [2/16] %v604, 128
        %639 = vxpose.xlu0.b32.cont [3/16] 0.0, 128
        %640 = vxpose.xlu0.b32.cont [4/16] 0.0, 128
        %641 = vxpose.xlu0.b32.cont [5/16] 0.0, 128
        %642 = vxpose.xlu0.b32.cont [6/16] 0.0, 128
        %643 = vxpose.xlu0.b32.cont [7/16] 0.0, 128
        %644 = vxpose.xlu0.b32.cont [8/16] 0.0, 128
        %645 = vxpose.xlu0.b32.cont [9/16] 0.0, 128
        %646 = vxpose.xlu0.b32.cont [10/16] 0.0, 128
        %647 = vxpose.xlu0.b32.cont [11/16] 0.0, 128
        %648 = vxpose.xlu0.b32.cont [12/16] 0.0, 128
        %649 = vxpose.xlu0.b32.cont [13/16] 0.0, 128
        %650 = vxpose.xlu0.b32.cont [14/16] 0.0, 128
        %651 = vxpose.xlu0.b32.cont [15/16] 0.0, 128
        %652 = vxpose.xlu0.b32.end [16/16] 0.0, 128
        %v653 = vpop.trf.xlu0
        %v654 = vpop.trf.xlu0
        %v655 = vpop.trf.xlu0
        %v656 = vpop.trf.xlu0
        %v657 = vpop.trf.xlu0
        %v658 = vpop.trf.xlu0
        %v659 = vpop.trf.xlu0
        %v660 = vpop.trf.xlu0
        %v661 = vpop.trf.xlu0
        %v662 = vpop.trf.xlu0
        %v663 = vpop.trf.xlu0
        %v664 = vpop.trf.xlu0
        %v665 = vpop.trf.xlu0
        %v666 = vpop.trf.xlu0
        %v667 = vpop.trf.xlu0
        %v668 = vpop.trf.xlu0
        %v669 = vpack.c.bf16 %v622, %v621
        %v670 = vpack.c.bf16 %v624, %v623
        %v671 = vpack.c.bf16 %v626, %v625
        %v672 = vpack.c.bf16 %v628, %v627
        %v673 = vpack.c.bf16 %v630, %v629
        %v674 = vpack.c.bf16 %v632, %v631
        %v675 = vpack.c.bf16 %v634, %v633
        %v676 = vpack.c.bf16 %v636, %v635
        %v677 = vpack.c.bf16 %v654, %v653
        %v678 = vpack.c.bf16 %v656, %v655
        %v679 = vpack.c.bf16 %v658, %v657
        %v680 = vpack.c.bf16 %v660, %v659
        %v681 = vpack.c.bf16 %v662, %v661
        %v682 = vpack.c.bf16 %v664, %v663
        %v683 = vpack.c.bf16 %v666, %v665
        %v684 = vpack.c.bf16 %v668, %v667
        %v685 = vld [vmem:[%s3] sm:$0xf]
        %v686 = vld [vmem:[%s3 + $0x4] sm:$0xf]
        %v687 = vld [vmem:[%s4] sm:$0x1]
        %v689 = vperm.slane %v687, 0
        %v693 = vunpack.c.l.b16 %v685
        %v694 = vunpack.c.l.b16 %v686
        %v695 = vpack.c.b16 %v694, %v693
        %vm697 = vcmask 130048
        %v699 = vsel %vm697, %v669, 0
        %v702 = vsel %vm697, %v670, 0
        %v705 = vsel %vm697, %v671, 0
        %v708 = vsel %vm697, %v672, 0
        %v711 = vsel %vm697, %v673, 0
        %v714 = vsel %vm697, %v674, 0
        %v717 = vsel %vm697, %v675, 0
        %v720 = vsel %vm697, %v676, 0
        %v723 = vsel %vm697, %v677, 0
        %v726 = vsel %vm697, %v678, 0
        %v729 = vsel %vm697, %v679, 0
        %v732 = vsel %vm697, %v680, 0
        %v735 = vsel %vm697, %v681, 0
        %v738 = vsel %vm697, %v682, 0
        %v741 = vsel %vm697, %v683, 0
        %v744 = vsel %vm697, %v684, 0
        %746 = vmatpush.bf16.msra.mxu0 0
        %747 = vmatpush.bf16.msra.mxu0 0
        %748 = vmatpush.bf16.msra.mxu0 0
        %749 = vmatpush.bf16.msra.mxu0 0
        %750 = vmatpush.bf16.msra.mxu0 0
        %751 = vmatpush.bf16.msra.mxu0 0
        %752 = vmatpush.bf16.msra.mxu0 0
        %753 = vmatpush.bf16.msra.mxu0 %v695
        %754 = vmatmul.bf16.gmra.mxu0 %v699
        %v755 = vpop.f32.mrf.mxu0
        %v756 = vadd.f32 %v689, %v755
        %v757 = vpop.f32.mrf.mxu0
        %v758 = vadd.f32 %v689, %v757
        %759 = vmatmul.bf16.gmra.mxu0 %v702
        %v760 = vpop.f32.mrf.mxu0
        %v761 = vadd.f32 %v689, %v760
        %v762 = vpop.f32.mrf.mxu0
        %v763 = vadd.f32 %v689, %v762
        %764 = vmatmul.bf16.gmra.mxu0 %v705
        %v765 = vpop.f32.mrf.mxu0
        %v766 = vadd.f32 %v689, %v765
        %v767 = vpop.f32.mrf.mxu0
        %v768 = vadd.f32 %v689, %v767
        %769 = vmatmul.bf16.gmra.mxu0 %v708
        %v770 = vpop.f32.mrf.mxu0
        %v771 = vadd.f32 %v689, %v770
        %v772 = vpop.f32.mrf.mxu0
        %v773 = vadd.f32 %v689, %v772
        %774 = vmatmul.bf16.gmra.mxu0 %v711
        %v775 = vpop.f32.mrf.mxu0
        %v776 = vadd.f32 %v689, %v775
        %v777 = vpop.f32.mrf.mxu0
        %v778 = vadd.f32 %v689, %v777
        %779 = vmatmul.bf16.gmra.mxu0 %v714
        %v780 = vpop.f32.mrf.mxu0
        %v781 = vadd.f32 %v689, %v780
        %v782 = vpop.f32.mrf.mxu0
        %v783 = vadd.f32 %v689, %v782
        %784 = vmatmul.bf16.gmra.mxu0 %v717
        %v785 = vpop.f32.mrf.mxu0
        %v786 = vadd.f32 %v689, %v785
        %v787 = vpop.f32.mrf.mxu0
        %v788 = vadd.f32 %v689, %v787
        %789 = vmatmul.bf16.gmra.mxu0 %v720
        %v790 = vpop.f32.mrf.mxu0
        %v791 = vadd.f32 %v689, %v790
        %v792 = vpop.f32.mrf.mxu0
        %v793 = vadd.f32 %v689, %v792
        %794 = vmatmul.bf16.gmra.mxu0 %v723
        %v795 = vpop.f32.mrf.mxu0
        %v796 = vadd.f32 %v689, %v795
        %v797 = vpop.f32.mrf.mxu0
        %v798 = vadd.f32 %v689, %v797
        %799 = vmatmul.bf16.gmra.mxu0 %v726
        %v800 = vpop.f32.mrf.mxu0
        %v801 = vadd.f32 %v689, %v800
        %v802 = vpop.f32.mrf.mxu0
        %v803 = vadd.f32 %v689, %v802
        %804 = vmatmul.bf16.gmra.mxu0 %v729
        %v805 = vpop.f32.mrf.mxu0
        %v806 = vadd.f32 %v689, %v805
        %v807 = vpop.f32.mrf.mxu0
        %v808 = vadd.f32 %v689, %v807
        %809 = vmatmul.bf16.gmra.mxu0 %v732
        %v810 = vpop.f32.mrf.mxu0
        %v811 = vadd.f32 %v689, %v810
        %v812 = vpop.f32.mrf.mxu0
        %v813 = vadd.f32 %v689, %v812
        %814 = vmatmul.bf16.gmra.mxu0 %v735
        %v815 = vpop.f32.mrf.mxu0
        %v816 = vadd.f32 %v689, %v815
        %v817 = vpop.f32.mrf.mxu0
        %v818 = vadd.f32 %v689, %v817
        %819 = vmatmul.bf16.gmra.mxu0 %v738
        %v820 = vpop.f32.mrf.mxu0
        %v821 = vadd.f32 %v689, %v820
        %v822 = vpop.f32.mrf.mxu0
        %v823 = vadd.f32 %v689, %v822
        %824 = vmatmul.bf16.gmra.mxu0 %v741
        %v825 = vpop.f32.mrf.mxu0
        %v826 = vadd.f32 %v689, %v825
        %v827 = vpop.f32.mrf.mxu0
        %v828 = vadd.f32 %v689, %v827
        %829 = vmatmul.bf16.gmra.mxu0 %v744
        %v830 = vpop.f32.mrf.mxu0
        %v831 = vadd.f32 %v689, %v830
        %v832 = vpop.f32.mrf.mxu0
        %v833 = vadd.f32 %v689, %v832
        %834 = vdwg.mxu0
        %v835 = vmul.f32 %v756, 0.5
        %v836 = vmul.f32 %v758, 0.5
        %v837 = vmul.f32 %v761, 0.5
        %v838 = vmul.f32 %v763, 0.5
        %v839 = vmul.f32 %v766, 0.5
        %v840 = vmul.f32 %v768, 0.5
        %v841 = vmul.f32 %v771, 0.5
        %v842 = vmul.f32 %v773, 0.5
        %v843 = vmul.f32 %v776, 0.5
        %v844 = vmul.f32 %v778, 0.5
        %v845 = vmul.f32 %v781, 0.5
        %v846 = vmul.f32 %v783, 0.5
        %v847 = vmul.f32 %v786, 0.5
        %v848 = vmul.f32 %v788, 0.5
        %v849 = vmul.f32 %v791, 0.5
        %v850 = vmul.f32 %v793, 0.5
        %v851 = vmul.f32 %v796, 0.5
        %v852 = vmul.f32 %v798, 0.5
        %v853 = vmul.f32 %v801, 0.5
        %v854 = vmul.f32 %v803, 0.5
        %v855 = vmul.f32 %v806, 0.5
        %v856 = vmul.f32 %v808, 0.5
        %v857 = vmul.f32 %v811, 0.5
        %v858 = vmul.f32 %v813, 0.5
        %v859 = vmul.f32 %v816, 0.5
        %v860 = vmul.f32 %v818, 0.5
        %v861 = vmul.f32 %v821, 0.5
        %v862 = vmul.f32 %v823, 0.5
        %v863 = vmul.f32 %v826, 0.5
        %v864 = vmul.f32 %v828, 0.5
        %v865 = vmul.f32 %v831, 0.5
        %v866 = vmul.f32 %v833, 0.5
        %v867 = vmul.f32 %v756, 0.044715
        %v868 = vmul.f32 %v758, 0.044715
        %v869 = vmul.f32 %v761, 0.044715
        %v870 = vmul.f32 %v763, 0.044715
        %v871 = vmul.f32 %v766, 0.044715
        %v872 = vmul.f32 %v768, 0.044715
        %v873 = vmul.f32 %v771, 0.044715
        %v874 = vmul.f32 %v773, 0.044715
        %v875 = vmul.f32 %v776, 0.044715
        %v876 = vmul.f32 %v778, 0.044715
        %v877 = vmul.f32 %v781, 0.044715
        %v878 = vmul.f32 %v783, 0.044715
        %v879 = vmul.f32 %v786, 0.044715
        %v880 = vmul.f32 %v788, 0.044715
        %v881 = vmul.f32 %v791, 0.044715
        %v882 = vmul.f32 %v793, 0.044715
        %v883 = vmul.f32 %v796, 0.044715
        %v884 = vmul.f32 %v798, 0.044715
        %v885 = vmul.f32 %v801, 0.044715
        %v886 = vmul.f32 %v803, 0.044715
        %v887 = vmul.f32 %v806, 0.044715
        %v888 = vmul.f32 %v808, 0.044715
        %v889 = vmul.f32 %v811, 0.044715
        %v890 = vmul.f32 %v813, 0.044715
        %v891 = vmul.f32 %v816, 0.044715
        %v892 = vmul.f32 %v818, 0.044715
        %v893 = vmul.f32 %v821, 0.044715
        %v894 = vmul.f32 %v823, 0.044715
        %v895 = vmul.f32 %v826, 0.044715
        %v896 = vmul.f32 %v828, 0.044715
        %v897 = vmul.f32 %v831, 0.044715
        %v898 = vmul.f32 %v833, 0.044715
        %v899 = vmul.f32 %v867, %v756
        %v900 = vmul.f32 %v868, %v758
        %v901 = vmul.f32 %v869, %v761
        %v902 = vmul.f32 %v870, %v763
        %v903 = vmul.f32 %v871, %v766
        %v904 = vmul.f32 %v872, %v768
        %v905 = vmul.f32 %v873, %v771
        %v906 = vmul.f32 %v874, %v773
        %v907 = vmul.f32 %v875, %v776
        %v908 = vmul.f32 %v876, %v778
        %v909 = vmul.f32 %v877, %v781
        %v910 = vmul.f32 %v878, %v783
        %v911 = vmul.f32 %v879, %v786
        %v912 = vmul.f32 %v880, %v788
        %v913 = vmul.f32 %v881, %v791
        %v914 = vmul.f32 %v882, %v793
        %v915 = vmul.f32 %v883, %v796
        %v916 = vmul.f32 %v884, %v798
        %v917 = vmul.f32 %v885, %v801
        %v918 = vmul.f32 %v886, %v803
        %v919 = vmul.f32 %v887, %v806
        %v920 = vmul.f32 %v888, %v808
        %v921 = vmul.f32 %v889, %v811
        %v922 = vmul.f32 %v890, %v813
        %v923 = vmul.f32 %v891, %v816
        %v924 = vmul.f32 %v892, %v818
        %v925 = vmul.f32 %v893, %v821
        %v926 = vmul.f32 %v894, %v823
        %v927 = vmul.f32 %v895, %v826
        %v928 = vmul.f32 %v896, %v828
        %v929 = vmul.f32 %v897, %v831
        %v930 = vmul.f32 %v898, %v833
        %v931 = vmul.f32 %v899, %v756
        %v932 = vmul.f32 %v900, %v758
        %v933 = vmul.f32 %v901, %v761
        %v934 = vmul.f32 %v902, %v763
        %v935 = vmul.f32 %v903, %v766
        %v936 = vmul.f32 %v904, %v768
        %v937 = vmul.f32 %v905, %v771
        %v938 = vmul.f32 %v906, %v773
        %v939 = vmul.f32 %v907, %v776
        %v940 = vmul.f32 %v908, %v778
        %v941 = vmul.f32 %v909, %v781
        %v942 = vmul.f32 %v910, %v783
        %v943 = vmul.f32 %v911, %v786
        %v944 = vmul.f32 %v912, %v788
        %v945 = vmul.f32 %v913, %v791
        %v946 = vmul.f32 %v914, %v793
        %v947 = vmul.f32 %v915, %v796
        %v948 = vmul.f32 %v916, %v798
        %v949 = vmul.f32 %v917, %v801
        %v950 = vmul.f32 %v918, %v803
        %v951 = vmul.f32 %v919, %v806
        %v952 = vmul.f32 %v920, %v808
        %v953 = vmul.f32 %v921, %v811
        %v954 = vmul.f32 %v922, %v813
        %v955 = vmul.f32 %v923, %v816
        %v956 = vmul.f32 %v924, %v818
        %v957 = vmul.f32 %v925, %v821
        %v958 = vmul.f32 %v926, %v823
        %v959 = vmul.f32 %v927, %v826
        %v960 = vmul.f32 %v928, %v828
        %v961 = vmul.f32 %v929, %v831
        %v962 = vmul.f32 %v930, %v833
        %v963 = vadd.f32 %v756, %v931
        %v964 = vadd.f32 %v758, %v932
        %v965 = vadd.f32 %v761, %v933
        %v966 = vadd.f32 %v763, %v934
        %v967 = vadd.f32 %v766, %v935
        %v968 = vadd.f32 %v768, %v936
        %v969 = vadd.f32 %v771, %v937
        %v970 = vadd.f32 %v773, %v938
        %v971 = vadd.f32 %v776, %v939
        %v972 = vadd.f32 %v778, %v940
        %v973 = vadd.f32 %v781, %v941
        %v974 = vadd.f32 %v783, %v942
        %v975 = vadd.f32 %v786, %v943
        %v976 = vadd.f32 %v788, %v944
        %v977 = vadd.f32 %v791, %v945
        %v978 = vadd.f32 %v793, %v946
        %v979 = vadd.f32 %v796, %v947
        %v980 = vadd.f32 %v798, %v948
        %v981 = vadd.f32 %v801, %v949
        %v982 = vadd.f32 %v803, %v950
        %v983 = vadd.f32 %v806, %v951
        %v984 = vadd.f32 %v808, %v952
        %v985 = vadd.f32 %v811, %v953
        %v986 = vadd.f32 %v813, %v954
        %v987 = vadd.f32 %v816, %v955
        %v988 = vadd.f32 %v818, %v956
        %v989 = vadd.f32 %v821, %v957
        %v990 = vadd.f32 %v823, %v958
        %v991 = vadd.f32 %v826, %v959
        %v992 = vadd.f32 %v828, %v960
        %v993 = vadd.f32 %v831, %v961
        %v994 = vadd.f32 %v833, %v962
        %v995 = vmul.f32 %v963, 0.7978846
        %v996 = vmul.f32 %v964, 0.7978846
        %v997 = vmul.f32 %v965, 0.7978846
        %v998 = vmul.f32 %v966, 0.7978846
        %v999 = vmul.f32 %v967, 0.7978846
        %v1000 = vmul.f32 %v968, 0.7978846
        %v1001 = vmul.f32 %v969, 0.7978846
        %v1002 = vmul.f32 %v970, 0.7978846
        %v1003 = vmul.f32 %v971, 0.7978846
        %v1004 = vmul.f32 %v972, 0.7978846
        %v1005 = vmul.f32 %v973, 0.7978846
        %v1006 = vmul.f32 %v974, 0.7978846
        %v1007 = vmul.f32 %v975, 0.7978846
        %v1008 = vmul.f32 %v976, 0.7978846
        %v1009 = vmul.f32 %v977, 0.7978846
        %v1010 = vmul.f32 %v978, 0.7978846
        %v1011 = vmul.f32 %v979, 0.7978846
        %v1012 = vmul.f32 %v980, 0.7978846
        %v1013 = vmul.f32 %v981, 0.7978846
        %v1014 = vmul.f32 %v982, 0.7978846
        %v1015 = vmul.f32 %v983, 0.7978846
        %v1016 = vmul.f32 %v984, 0.7978846
        %v1017 = vmul.f32 %v985, 0.7978846
        %v1018 = vmul.f32 %v986, 0.7978846
        %v1019 = vmul.f32 %v987, 0.7978846
        %v1020 = vmul.f32 %v988, 0.7978846
        %v1021 = vmul.f32 %v989, 0.7978846
        %v1022 = vmul.f32 %v990, 0.7978846
        %v1023 = vmul.f32 %v991, 0.7978846
        %v1024 = vmul.f32 %v992, 0.7978846
        %v1025 = vmul.f32 %v993, 0.7978846
        %v1026 = vmul.f32 %v994, 0.7978846
        %v1027 = vtanh.pop %v995
        %v1028 = vtanh.pop %v996
        %v1029 = vtanh.pop %v997
        %v1030 = vtanh.pop %v998
        %v1031 = vtanh.pop %v999
        %v1032 = vtanh.pop %v1000
        %v1033 = vtanh.pop %v1001
        %v1034 = vtanh.pop %v1002
        %v1035 = vtanh.pop %v1003
        %v1036 = vtanh.pop %v1004
        %v1037 = vtanh.pop %v1005
        %v1038 = vtanh.pop %v1006
        %v1039 = vtanh.pop %v1007
        %v1040 = vtanh.pop %v1008
        %v1041 = vtanh.pop %v1009
        %v1042 = vtanh.pop %v1010
        %v1043 = vtanh.pop %v1011
        %v1044 = vtanh.pop %v1012
        %v1045 = vtanh.pop %v1013
        %v1046 = vtanh.pop %v1014
        %v1047 = vtanh.pop %v1015
        %v1048 = vtanh.pop %v1016
        %v1049 = vtanh.pop %v1017
        %v1050 = vtanh.pop %v1018
        %v1051 = vtanh.pop %v1019
        %v1052 = vtanh.pop %v1020
        %v1053 = vtanh.pop %v1021
        %v1054 = vtanh.pop %v1022
        %v1055 = vtanh.pop %v1023
        %v1056 = vtanh.pop %v1024
        %v1057 = vtanh.pop %v1025
        %v1058 = vtanh.pop %v1026
        %v1059 = vadd.f32 %v1027, 1.0
        %v1060 = vadd.f32 %v1028, 1.0
        %v1061 = vadd.f32 %v1029, 1.0
        %v1062 = vadd.f32 %v1030, 1.0
        %v1063 = vadd.f32 %v1031, 1.0
        %v1064 = vadd.f32 %v1032, 1.0
        %v1065 = vadd.f32 %v1033, 1.0
        %v1066 = vadd.f32 %v1034, 1.0
        %v1067 = vadd.f32 %v1035, 1.0
        %v1068 = vadd.f32 %v1036, 1.0
        %v1069 = vadd.f32 %v1037, 1.0
        %v1070 = vadd.f32 %v1038, 1.0
        %v1071 = vadd.f32 %v1039, 1.0
        %v1072 = vadd.f32 %v1040, 1.0
        %v1073 = vadd.f32 %v1041, 1.0
        %v1074 = vadd.f32 %v1042, 1.0
        %v1075 = vadd.f32 %v1043, 1.0
        %v1076 = vadd.f32 %v1044, 1.0
        %v1077 = vadd.f32 %v1045, 1.0
        %v1078 = vadd.f32 %v1046, 1.0
        %v1079 = vadd.f32 %v1047, 1.0
        %v1080 = vadd.f32 %v1048, 1.0
        %v1081 = vadd.f32 %v1049, 1.0
        %v1082 = vadd.f32 %v1050, 1.0
        %v1083 = vadd.f32 %v1051, 1.0
        %v1084 = vadd.f32 %v1052, 1.0
        %v1085 = vadd.f32 %v1053, 1.0
        %v1086 = vadd.f32 %v1054, 1.0
        %v1087 = vadd.f32 %v1055, 1.0
        %v1088 = vadd.f32 %v1056, 1.0
        %v1089 = vadd.f32 %v1057, 1.0
        %v1090 = vadd.f32 %v1058, 1.0
        %v1091 = vmul.f32 %v835, %v1059
        %v1092 = vmul.f32 %v836, %v1060
        %v1093 = vmul.f32 %v837, %v1061
        %v1094 = vmul.f32 %v838, %v1062
        %v1095 = vmul.f32 %v839, %v1063
        %v1096 = vmul.f32 %v840, %v1064
        %v1097 = vmul.f32 %v841, %v1065
        %v1098 = vmul.f32 %v842, %v1066
        %v1099 = vmul.f32 %v843, %v1067
        %v1100 = vmul.f32 %v844, %v1068
        %v1101 = vmul.f32 %v845, %v1069
        %v1102 = vmul.f32 %v846, %v1070
        %v1103 = vmul.f32 %v847, %v1071
        %v1104 = vmul.f32 %v848, %v1072
        %v1105 = vmul.f32 %v849, %v1073
        %v1106 = vmul.f32 %v850, %v1074
        %v1107 = vmul.f32 %v851, %v1075
        %v1108 = vmul.f32 %v852, %v1076
        %v1109 = vmul.f32 %v853, %v1077
        %v1110 = vmul.f32 %v854, %v1078
        %v1111 = vmul.f32 %v855, %v1079
        %v1112 = vmul.f32 %v856, %v1080
        %v1113 = vmul.f32 %v857, %v1081
        %v1114 = vmul.f32 %v858, %v1082
        %v1115 = vmul.f32 %v859, %v1083
        %v1116 = vmul.f32 %v860, %v1084
        %v1117 = vmul.f32 %v861, %v1085
        %v1118 = vmul.f32 %v862, %v1086
        %v1119 = vmul.f32 %v863, %v1087
        %v1120 = vmul.f32 %v864, %v1088
        %v1121 = vmul.f32 %v865, %v1089
        %v1122 = vmul.f32 %v866, %v1090
        %v1123 = vpack.c.bf16 %v1092, %v1091
        %v1124 = vpack.c.bf16 %v1094, %v1093
        %v1125 = vpack.c.bf16 %v1096, %v1095
        %v1126 = vpack.c.bf16 %v1098, %v1097
        %v1127 = vpack.c.bf16 %v1100, %v1099
        %v1128 = vpack.c.bf16 %v1102, %v1101
        %v1129 = vpack.c.bf16 %v1104, %v1103
        %v1130 = vpack.c.bf16 %v1106, %v1105
        %v1131 = vpack.c.bf16 %v1108, %v1107
        %v1132 = vpack.c.bf16 %v1110, %v1109
        %v1133 = vpack.c.bf16 %v1112, %v1111
        %v1134 = vpack.c.bf16 %v1114, %v1113
        %v1135 = vpack.c.bf16 %v1116, %v1115
        %v1136 = vpack.c.bf16 %v1118, %v1117
        %v1137 = vpack.c.bf16 %v1120, %v1119
        %v1138 = vpack.c.bf16 %v1122, %v1121
        %v1139 = vld [vmem:[%s5] sm:$0xf]
        %v1140 = vld [vmem:[%s5 + $0x4] sm:$0xf]
        %v1141 = vld [vmem:[%s5 + $0x8] sm:$0xf]
        %v1142 = vld [vmem:[%s5 + $0xc] sm:$0xf]
        %v1143 = vld [vmem:[%s5 + $0x10] sm:$0xf]
        %v1144 = vld [vmem:[%s5 + $0x14] sm:$0xf]
        %v1145 = vld [vmem:[%s5 + $0x18] sm:$0xf]
        %v1146 = vld [vmem:[%s5 + $0x1c] sm:$0xf]
        %v1147 = vld [vmem:[%s6] sm:$0x1]
        %v1149 = vperm.slane %v1147, 0
        %v1159 = vunpack.c.l.b16 %v1139
        %v1160 = vunpack.c.l.b16 %v1140
        %v1161 = vunpack.c.l.b16 %v1141
        %v1162 = vunpack.c.l.b16 %v1142
        %v1163 = vunpack.c.l.b16 %v1143
        %v1164 = vunpack.c.l.b16 %v1144
        %v1165 = vunpack.c.l.b16 %v1145
        %v1166 = vunpack.c.l.b16 %v1146
        %v1167 = vpack.c.b16 %v1160, %v1159
        %v1168 = vpack.c.b16 %v1162, %v1161
        %v1169 = vpack.c.b16 %v1164, %v1163
        %v1170 = vpack.c.b16 %v1166, %v1165
        %vm1175 = vcmask 523264
        %v1177 = vsel %vm1175, %v1123, 0
        %v1180 = vsel %vm1175, %v1124, 0
        %v1183 = vsel %vm1175, %v1125, 0
        %v1186 = vsel %vm1175, %v1126, 0
        %v1189 = vsel %vm1175, %v1127, 0
        %v1192 = vsel %vm1175, %v1128, 0
        %v1195 = vsel %vm1175, %v1129, 0
        %v1198 = vsel %vm1175, %v1130, 0
        %v1201 = vsel %vm1175, %v1131, 0
        %v1204 = vsel %vm1175, %v1132, 0
        %v1207 = vsel %vm1175, %v1133, 0
        %v1210 = vsel %vm1175, %v1134, 0
        %v1213 = vsel %vm1175, %v1135, 0
        %v1216 = vsel %vm1175, %v1136, 0
        %v1219 = vsel %vm1175, %v1137, 0
        %v1222 = vsel %vm1175, %v1138, 0
        %1224 = vmatpush.bf16.msra.mxu0 0
        %1225 = vmatpush.bf16.msra.mxu0 0
        %1226 = vmatpush.bf16.msra.mxu0 0
        %1227 = vmatpush.bf16.msra.mxu0 0
        %1228 = vmatpush.bf16.msra.mxu0 %v1170
        %1229 = vmatpush.bf16.msra.mxu0 %v1169
        %1230 = vmatpush.bf16.msra.mxu0 %v1168
        %1231 = vmatpush.bf16.msra.mxu0 %v1167
        %1232 = vmatmul.bf16.gmra.mxu0 %v1177
        %v1233 = vpop.f32.mrf.mxu0
        %v1234 = vadd.f32 %v1149, %v1233
        %v1235 = vpop.f32.mrf.mxu0
        %v1236 = vadd.f32 %v1149, %v1235
        %1237 = vmatmul.bf16.gmra.mxu0 %v1180
        %v1238 = vpop.f32.mrf.mxu0
        %v1239 = vadd.f32 %v1149, %v1238
        %v1240 = vpop.f32.mrf.mxu0
        %v1241 = vadd.f32 %v1149, %v1240
        %1242 = vmatmul.bf16.gmra.mxu0 %v1183
        %v1243 = vpop.f32.mrf.mxu0
        %v1244 = vadd.f32 %v1149, %v1243
        %v1245 = vpop.f32.mrf.mxu0
        %v1246 = vadd.f32 %v1149, %v1245
        %1247 = vmatmul.bf16.gmra.mxu0 %v1186
        %v1248 = vpop.f32.mrf.mxu0
        %v1249 = vadd.f32 %v1149, %v1248
        %v1250 = vpop.f32.mrf.mxu0
        %v1251 = vadd.f32 %v1149, %v1250
        %1252 = vmatmul.bf16.gmra.mxu0 %v1189
        %v1253 = vpop.f32.mrf.mxu0
        %v1254 = vadd.f32 %v1149, %v1253
        %v1255 = vpop.f32.mrf.mxu0
        %v1256 = vadd.f32 %v1149, %v1255
        %1257 = vmatmul.bf16.gmra.mxu0 %v1192
        %v1258 = vpop.f32.mrf.mxu0
        %v1259 = vadd.f32 %v1149, %v1258
        %v1260 = vpop.f32.mrf.mxu0
        %v1261 = vadd.f32 %v1149, %v1260
        %1262 = vmatmul.bf16.gmra.mxu0 %v1195
        %v1263 = vpop.f32.mrf.mxu0
        %v1264 = vadd.f32 %v1149, %v1263
        %v1265 = vpop.f32.mrf.mxu0
        %v1266 = vadd.f32 %v1149, %v1265
        %1267 = vmatmul.bf16.gmra.mxu0 %v1198
        %v1268 = vpop.f32.mrf.mxu0
        %v1269 = vadd.f32 %v1149, %v1268
        %v1270 = vpop.f32.mrf.mxu0
        %v1271 = vadd.f32 %v1149, %v1270
        %1272 = vmatmul.bf16.gmra.mxu0 %v1201
        %v1273 = vpop.f32.mrf.mxu0
        %v1274 = vadd.f32 %v1149, %v1273
        %v1275 = vpop.f32.mrf.mxu0
        %v1276 = vadd.f32 %v1149, %v1275
        %1277 = vmatmul.bf16.gmra.mxu0 %v1204
        %v1278 = vpop.f32.mrf.mxu0
        %v1279 = vadd.f32 %v1149, %v1278
        %v1280 = vpop.f32.mrf.mxu0
        %v1281 = vadd.f32 %v1149, %v1280
        %1282 = vmatmul.bf16.gmra.mxu0 %v1207
        %v1283 = vpop.f32.mrf.mxu0
        %v1284 = vadd.f32 %v1149, %v1283
        %v1285 = vpop.f32.mrf.mxu0
        %v1286 = vadd.f32 %v1149, %v1285
        %1287 = vmatmul.bf16.gmra.mxu0 %v1210
        %v1288 = vpop.f32.mrf.mxu0
        %v1289 = vadd.f32 %v1149, %v1288
        %v1290 = vpop.f32.mrf.mxu0
        %v1291 = vadd.f32 %v1149, %v1290
        %1292 = vmatmul.bf16.gmra.mxu0 %v1213
        %v1293 = vpop.f32.mrf.mxu0
        %v1294 = vadd.f32 %v1149, %v1293
        %v1295 = vpop.f32.mrf.mxu0
        %v1296 = vadd.f32 %v1149, %v1295
        %1297 = vmatmul.bf16.gmra.mxu0 %v1216
        %v1298 = vpop.f32.mrf.mxu0
        %v1299 = vadd.f32 %v1149, %v1298
        %v1300 = vpop.f32.mrf.mxu0
        %v1301 = vadd.f32 %v1149, %v1300
        %1302 = vmatmul.bf16.gmra.mxu0 %v1219
        %v1303 = vpop.f32.mrf.mxu0
        %v1304 = vadd.f32 %v1149, %v1303
        %v1305 = vpop.f32.mrf.mxu0
        %v1306 = vadd.f32 %v1149, %v1305
        %1307 = vmatmul.bf16.gmra.mxu0 %v1222
        %v1308 = vpop.f32.mrf.mxu0
        %v1309 = vadd.f32 %v1149, %v1308
        %v1310 = vpop.f32.mrf.mxu0
        %v1311 = vadd.f32 %v1149, %v1310
        %1312 = vdwg.mxu0
        %1313 = vxpose.xlu0.b32.start [1/16] %v1234, 128
        %1314 = vxpose.xlu0.b32.cont [2/16] %v1236, 128
        %1315 = vxpose.xlu0.b32.cont [3/16] %v1239, 128
        %1316 = vxpose.xlu0.b32.cont [4/16] %v1241, 128
        %1317 = vxpose.xlu0.b32.cont [5/16] %v1244, 128
        %1318 = vxpose.xlu0.b32.cont [6/16] %v1246, 128
        %1319 = vxpose.xlu0.b32.cont [7/16] %v1249, 128
        %1320 = vxpose.xlu0.b32.cont [8/16] %v1251, 128
        %1321 = vxpose.xlu0.b32.cont [9/16] %v1254, 128
        %1322 = vxpose.xlu0.b32.cont [10/16] %v1256, 128
        %1323 = vxpose.xlu0.b32.cont [11/16] %v1259, 128
        %1324 = vxpose.xlu0.b32.cont [12/16] %v1261, 128
        %1325 = vxpose.xlu0.b32.cont [13/16] %v1264, 128
        %1326 = vxpose.xlu0.b32.cont [14/16] %v1266, 128
        %1327 = vxpose.xlu0.b32.cont [15/16] %v1269, 128
        %1328 = vxpose.xlu0.b32.end [16/16] %v1271, 128
        %v1329 = vpop.trf.xlu0
        %v1330 = vpop.trf.xlu0
        %v1331 = vpop.trf.xlu0
        %v1332 = vpop.trf.xlu0
        %v1333 = vpop.trf.xlu0
        %v1334 = vpop.trf.xlu0
        %v1335 = vpop.trf.xlu0
        %v1336 = vpop.trf.xlu0
        %v1337 = vpop.trf.xlu0
        %v1338 = vpop.trf.xlu0
        %v1339 = vpop.trf.xlu0
        %v1340 = vpop.trf.xlu0
        %v1341 = vpop.trf.xlu0
        %v1342 = vpop.trf.xlu0
        %v1343 = vpop.trf.xlu0
        %v1344 = vpop.trf.xlu0
        %1345 = vxpose.xlu0.b32.start [1/16] %v1274, 128
        %1346 = vxpose.xlu0.b32.cont [2/16] %v1276, 128
        %1347 = vxpose.xlu0.b32.cont [3/16] %v1279, 128
        %1348 = vxpose.xlu0.b32.cont [4/16] %v1281, 128
        %1349 = vxpose.xlu0.b32.cont [5/16] %v1284, 128
        %1350 = vxpose.xlu0.b32.cont [6/16] %v1286, 128
        %1351 = vxpose.xlu0.b32.cont [7/16] %v1289, 128
        %1352 = vxpose.xlu0.b32.cont [8/16] %v1291, 128
        %1353 = vxpose.xlu0.b32.cont [9/16] %v1294, 128
        %1354 = vxpose.xlu0.b32.cont [10/16] %v1296, 128
        %1355 = vxpose.xlu0.b32.cont [11/16] %v1299, 128
        %1356 = vxpose.xlu0.b32.cont [12/16] %v1301, 128
        %1357 = vxpose.xlu0.b32.cont [13/16] %v1304, 128
        %1358 = vxpose.xlu0.b32.cont [14/16] %v1306, 128
        %1359 = vxpose.xlu0.b32.cont [15/16] %v1309, 128
        %1360 = vxpose.xlu0.b32.end [16/16] %v1311, 128
        %v1361 = vpop.trf.xlu0
        %v1362 = vpop.trf.xlu0
        %v1363 = vpop.trf.xlu0
        %v1364 = vpop.trf.xlu0
        %v1365 = vpop.trf.xlu0
        %v1366 = vpop.trf.xlu0
        %v1367 = vpop.trf.xlu0
        %v1368 = vpop.trf.xlu0
        %v1369 = vpop.trf.xlu0
        %v1370 = vpop.trf.xlu0
        %v1371 = vpop.trf.xlu0
        %v1372 = vpop.trf.xlu0
        %v1373 = vpop.trf.xlu0
        %v1374 = vpop.trf.xlu0
        %v1375 = vpop.trf.xlu0
        %v1376 = vpop.trf.xlu0
        %v1377 = vadd.f32 %v498, %v1329
        %v1378 = vadd.f32 %v499, %v1330
        %v1379 = vadd.f32 %v500, %v1361
        %v1380 = vadd.f32 %v501, %v1362
        %v1381 = vld [vmem:[%s7] sm:$0x1]
        %v1382 = vld [vmem:[%s8] sm:$0x1]
        %1383 = vadd.xlane.f32.xlu0 %v1377
        %v1384 = vpop.xlane.xlu0 %1383
        %1385 = vadd.xlane.f32.xlu0 %v1378
        %v1386 = vpop.xlane.xlu0 %1385
        %1387 = vadd.xlane.f32.xlu0 %v1379
        %v1388 = vpop.xlane.xlu0 %1387
        %1389 = vadd.xlane.f32.xlu0 %v1380
        %v1390 = vpop.xlane.xlu0 %1389
        %v1391 = vmul.f32 %v1384, %v518
        %v1392 = vmul.f32 %v1386, %v518
        %v1393 = vmul.f32 %v1388, %v518
        %v1394 = vmul.f32 %v1390, %v518
        %v1395 = vsub.f32 %v1377, %v1391
        %v1396 = vsub.f32 %v1378, %v1392
        %v1397 = vsub.f32 %v1379, %v1393
        %v1398 = vsub.f32 %v1380, %v1394
        %v1399 = vmul.f32 %v1395, %v1395
        %v1400 = vmul.f32 %v1396, %v1396
        %v1401 = vmul.f32 %v1397, %v1397
        %v1402 = vmul.f32 %v1398, %v1398
        %1403 = vadd.xlane.f32.xlu0 %v1399
        %v1404 = vpop.xlane.xlu0 %1403
        %1405 = vadd.xlane.f32.xlu0 %v1400
        %v1406 = vpop.xlane.xlu0 %1405
        %1407 = vadd.xlane.f32.xlu0 %v1401
        %v1408 = vpop.xlane.xlu0 %1407
        %1409 = vadd.xlane.f32.xlu0 %v1402
        %v1410 = vpop.xlane.xlu0 %1409
        %v1411 = vmul.f32 %v1404, %v518
        %v1412 = vmul.f32 %v1406, %v518
        %v1413 = vmul.f32 %v1408, %v518
        %v1414 = vmul.f32 %v1410, %v518
        %v1415 = vadd.f32 %v1411, 1e-05
        %v1416 = vadd.f32 %v1412, 1e-05
        %v1417 = vadd.f32 %v1413, 1e-05
        %v1418 = vadd.f32 %v1414, 1e-05
        %v1419 = vrsqrt.pop %v1415
        %v1420 = vmul.f32 %v1419, %v1415
        %v1421 = vmul.f32 %v1420, %v1419
        %v1422 = vmul.f32 0.5, %v1421
        %v1423 = vsub.f32 1.5, %v1422
        %v1424 = vmul.f32 %v1419, %v1423
        %vm1425 = vweird.f32 %v1415
        %vm1426 = vweird.f32 %v1419
        %vm1427 = vmor %vm1425, %vm1426
        %v1428 = vsel %vm1427, %v1419, %v1424
        %v1429 = vrsqrt.pop %v1416
        %v1430 = vmul.f32 %v1429, %v1416
        %v1431 = vmul.f32 %v1430, %v1429
        %v1432 = vmul.f32 0.5, %v1431
        %v1433 = vsub.f32 1.5, %v1432
        %v1434 = vmul.f32 %v1429, %v1433
        %vm1435 = vweird.f32 %v1416
        %vm1436 = vweird.f32 %v1429
        %vm1437 = vmor %vm1435, %vm1436
        %v1438 = vsel %vm1437, %v1429, %v1434
        %v1439 = vrsqrt.pop %v1417
        %v1440 = vmul.f32 %v1439, %v1417
        %v1441 = vmul.f32 %v1440, %v1439
        %v1442 = vmul.f32 0.5, %v1441
        %v1443 = vsub.f32 1.5, %v1442
        %v1444 = vmul.f32 %v1439, %v1443
        %vm1445 = vweird.f32 %v1417
        %vm1446 = vweird.f32 %v1439
        %vm1447 = vmor %vm1445, %vm1446
        %v1448 = vsel %vm1447, %v1439, %v1444
        %v1449 = vrsqrt.pop %v1418
        %v1450 = vmul.f32 %v1449, %v1418
        %v1451 = vmul.f32 %v1450, %v1449
        %v1452 = vmul.f32 0.5, %v1451
        %v1453 = vsub.f32 1.5, %v1452
        %v1454 = vmul.f32 %v1449, %v1453
        %vm1455 = vweird.f32 %v1418
        %vm1456 = vweird.f32 %v1449
        %vm1457 = vmor %vm1455, %vm1456
        %v1458 = vsel %vm1457, %v1449, %v1454
        %v1459 = vmul.f32 %v1395, %v1428
        %v1460 = vmul.f32 %v1396, %v1438
        %v1461 = vmul.f32 %v1397, %v1448
        %v1462 = vmul.f32 %v1398, %v1458
        %v1464 = vperm.slane %v1381, 0
        %v1466 = vmul.f32 %v1459, %v1464
        %v1467 = vmul.f32 %v1460, %v1464
        %v1468 = vmul.f32 %v1461, %v1464
        %v1469 = vmul.f32 %v1462, %v1464
        %v1471 = vperm.slane %v1382, 0
        %v1473 = vadd.f32 %v1466, %v1471
        %v1474 = vadd.f32 %v1467, %v1471
        %v1475 = vadd.f32 %v1468, %v1471
        %v1476 = vadd.f32 %v1469, %v1471
        %v1477 = vpack.c.bf16 %v1474, %v1473
        %v1478 = vpack.c.bf16 %v1476, %v1475
        %v1479 = vld [vmem:[#allocation5] sm:$0xff]
        %v1480 = vld [vmem:[#allocation5 + $0x8] sm:$0xff]
        %v1481 = vld [vmem:[#allocation5 + $0x10] sm:$0xff]
        %v1482 = vld [vmem:[#allocation5 + $0x18] sm:$0xff]
        %v1483 = vld [vmem:[#allocation5 + $0x20] sm:$0xff]
        %v1484 = vld [vmem:[#allocation5 + $0x28] sm:$0xff]
        %v1485 = vld [vmem:[#allocation5 + $0x30] sm:$0xff]
        %v1486 = vld [vmem:[#allocation5 + $0x38] sm:$0xff]
        %v1487 = vld [vmem:[#allocation5 + $0x40] sm:$0xff]
        %v1488 = vld [vmem:[#allocation5 + $0x48] sm:$0xff]
        %v1489 = vld [vmem:[#allocation5 + $0x50] sm:$0xff]
        %v1490 = vld [vmem:[#allocation5 + $0x58] sm:$0xff]
        %v1491 = vld [vmem:[#allocation5 + $0x60] sm:$0xff]
        %v1492 = vld [vmem:[#allocation5 + $0x68] sm:$0xff]
        %v1493 = vld [vmem:[#allocation5 + $0x70] sm:$0xff]
        %v1494 = vld [vmem:[#allocation5 + $0x78] sm:$0xff]
        %v1495 = vld [vmem:[%s10] sm:$0x3]
        %v1497 = vperm.slane %v1495, 0
        %v1498 = vperm.slane %v1495, 1
        %v1517 = vunpack.c.l.b16 %v1479
        %v1518 = vunpack.c.h.b16 %v1479
        %v1519 = vunpack.c.l.b16 %v1480
        %v1520 = vunpack.c.h.b16 %v1480
        %v1521 = vunpack.c.l.b16 %v1481
        %v1522 = vunpack.c.h.b16 %v1481
        %v1523 = vunpack.c.l.b16 %v1482
        %v1524 = vunpack.c.h.b16 %v1482
        %v1525 = vunpack.c.l.b16 %v1483
        %v1526 = vunpack.c.h.b16 %v1483
        %v1527 = vunpack.c.l.b16 %v1484
        %v1528 = vunpack.c.h.b16 %v1484
        %v1529 = vunpack.c.l.b16 %v1485
        %v1530 = vunpack.c.h.b16 %v1485
        %v1531 = vunpack.c.l.b16 %v1486
        %v1532 = vunpack.c.h.b16 %v1486
        %v1533 = vunpack.c.l.b16 %v1487
        %v1534 = vunpack.c.h.b16 %v1487
        %v1535 = vunpack.c.l.b16 %v1488
        %v1536 = vunpack.c.h.b16 %v1488
        %v1537 = vunpack.c.l.b16 %v1489
        %v1538 = vunpack.c.h.b16 %v1489
        %v1539 = vunpack.c.l.b16 %v1490
        %v1540 = vunpack.c.h.b16 %v1490
        %v1541 = vunpack.c.l.b16 %v1491
        %v1542 = vunpack.c.h.b16 %v1491
        %v1543 = vunpack.c.l.b16 %v1492
        %v1544 = vunpack.c.h.b16 %v1492
        %v1545 = vunpack.c.l.b16 %v1493
        %v1546 = vunpack.c.h.b16 %v1493
        %v1547 = vunpack.c.l.b16 %v1494
        %v1548 = vunpack.c.h.b16 %v1494
        %v1549 = vpack.c.b16 %v1519, %v1517
        %v1550 = vpack.c.b16 %v1520, %v1518
        %v1551 = vpack.c.b16 %v1523, %v1521
        %v1552 = vpack.c.b16 %v1524, %v1522
        %v1553 = vpack.c.b16 %v1527, %v1525
        %v1554 = vpack.c.b16 %v1528, %v1526
        %v1555 = vpack.c.b16 %v1531, %v1529
        %v1556 = vpack.c.b16 %v1532, %v1530
        %v1557 = vpack.c.b16 %v1535, %v1533
        %v1558 = vpack.c.b16 %v1536, %v1534
        %v1559 = vpack.c.b16 %v1539, %v1537
        %v1560 = vpack.c.b16 %v1540, %v1538
        %v1561 = vpack.c.b16 %v1543, %v1541
        %v1562 = vpack.c.b16 %v1544, %v1542
        %v1563 = vpack.c.b16 %v1547, %v1545
        %v1564 = vpack.c.b16 %v1548, %v1546
        %1581 = vmatpush.bf16.msra.mxu0 %v1563
        %1582 = vmatpush.bf16.msra.mxu0 %v1561
        %1583 = vmatpush.bf16.msra.mxu0 %v1559
        %1584 = vmatpush.bf16.msra.mxu0 %v1557
        %1585 = vmatpush.bf16.msra.mxu0 %v1555
        %1586 = vmatpush.bf16.msra.mxu0 %v1553
        %1587 = vmatpush.bf16.msra.mxu0 %v1551
        %1588 = vmatpush.bf16.msra.mxu0 %v1549
        %1589 = vmatmul.bf16.gmra.mxu0 %v1477
        %v1590 = vpop.f32.mrf.mxu0
        %v1591 = vadd.f32 %v1497, %v1590
        %v1592 = vpop.f32.mrf.mxu0
        %v1593 = vadd.f32 %v1497, %v1592
        %1594 = vmatmul.bf16.gmra.mxu0 %v1478
        %v1595 = vpop.f32.mrf.mxu0
        %v1596 = vadd.f32 %v1497, %v1595
        %v1597 = vpop.f32.mrf.mxu0
        %v1598 = vadd.f32 %v1497, %v1597
        %1599 = vdwg.mxu0
        %1600 = vmatpush.bf16.msra.mxu0 %v1564
        %1601 = vmatpush.bf16.msra.mxu0 %v1562
        %1602 = vmatpush.bf16.msra.mxu0 %v1560
        %1603 = vmatpush.bf16.msra.mxu0 %v1558
        %1604 = vmatpush.bf16.msra.mxu0 %v1556
        %1605 = vmatpush.bf16.msra.mxu0 %v1554
        %1606 = vmatpush.bf16.msra.mxu0 %v1552
        %1607 = vmatpush.bf16.msra.mxu0 %v1550
        %1608 = vmatmul.bf16.gmra.mxu0 %v1477
        %v1609 = vpop.f32.mrf.mxu0
        %v1610 = vadd.f32 %v1498, %v1609
        %v1611 = vpop.f32.mrf.mxu0
        %v1612 = vadd.f32 %v1498, %v1611
        %1613 = vmatmul.bf16.gmra.mxu0 %v1478
        %v1614 = vpop.f32.mrf.mxu0
        %v1615 = vadd.f32 %v1498, %v1614
        %v1616 = vpop.f32.mrf.mxu0
        %v1617 = vadd.f32 %v1498, %v1616
        %1618 = vdwg.mxu0
        %v1619 = vmul.f32 %v1591, 0.5
        %v1620 = vmul.f32 %v1610, 0.5
        %v1621 = vmul.f32 %v1593, 0.5
        %v1622 = vmul.f32 %v1612, 0.5
        %v1623 = vmul.f32 %v1596, 0.5
        %v1624 = vmul.f32 %v1615, 0.5
        %v1625 = vmul.f32 %v1598, 0.5
        %v1626 = vmul.f32 %v1617, 0.5
        %v1627 = vmul.f32 %v1591, 0.044715
        %v1628 = vmul.f32 %v1610, 0.044715
        %v1629 = vmul.f32 %v1593, 0.044715
        %v1630 = vmul.f32 %v1612, 0.044715
        %v1631 = vmul.f32 %v1596, 0.044715
        %v1632 = vmul.f32 %v1615, 0.044715
        %v1633 = vmul.f32 %v1598, 0.044715
        %v1634 = vmul.f32 %v1617, 0.044715
        %v1635 = vmul.f32 %v1627, %v1591
        %v1636 = vmul.f32 %v1628, %v1610
        %v1637 = vmul.f32 %v1629, %v1593
        %v1638 = vmul.f32 %v1630, %v1612
        %v1639 = vmul.f32 %v1631, %v1596
        %v1640 = vmul.f32 %v1632, %v1615
        %v1641 = vmul.f32 %v1633, %v1598
        %v1642 = vmul.f32 %v1634, %v1617
        %v1643 = vmul.f32 %v1635, %v1591
        %v1644 = vmul.f32 %v1636, %v1610
        %v1645 = vmul.f32 %v1637, %v1593
        %v1646 = vmul.f32 %v1638, %v1612
        %v1647 = vmul.f32 %v1639, %v1596
        %v1648 = vmul.f32 %v1640, %v1615
        %v1649 = vmul.f32 %v1641, %v1598
        %v1650 = vmul.f32 %v1642, %v1617
        %v1651 = vadd.f32 %v1591, %v1643
        %v1652 = vadd.f32 %v1610, %v1644
        %v1653 = vadd.f32 %v1593, %v1645
        %v1654 = vadd.f32 %v1612, %v1646
        %v1655 = vadd.f32 %v1596, %v1647
        %v1656 = vadd.f32 %v1615, %v1648
        %v1657 = vadd.f32 %v1598, %v1649
        %v1658 = vadd.f32 %v1617, %v1650
        %v1659 = vmul.f32 %v1651, 0.7978846
        %v1660 = vmul.f32 %v1652, 0.7978846
        %v1661 = vmul.f32 %v1653, 0.7978846
        %v1662 = vmul.f32 %v1654, 0.7978846
        %v1663 = vmul.f32 %v1655, 0.7978846
        %v1664 = vmul.f32 %v1656, 0.7978846
        %v1665 = vmul.f32 %v1657, 0.7978846
        %v1666 = vmul.f32 %v1658, 0.7978846
        %v1667 = vtanh.pop %v1659
        %v1668 = vtanh.pop %v1660
        %v1669 = vtanh.pop %v1661
        %v1670 = vtanh.pop %v1662
        %v1671 = vtanh.pop %v1663
        %v1672 = vtanh.pop %v1664
        %v1673 = vtanh.pop %v1665
        %v1674 = vtanh.pop %v1666
        %v1675 = vadd.f32 %v1667, 1.0
        %v1676 = vadd.f32 %v1668, 1.0
        %v1677 = vadd.f32 %v1669, 1.0
        %v1678 = vadd.f32 %v1670, 1.0
        %v1679 = vadd.f32 %v1671, 1.0
        %v1680 = vadd.f32 %v1672, 1.0
        %v1681 = vadd.f32 %v1673, 1.0
        %v1682 = vadd.f32 %v1674, 1.0
        %v1683 = vmul.f32 %v1619, %v1675
        %v1684 = vmul.f32 %v1620, %v1676
        %v1685 = vmul.f32 %v1621, %v1677
        %v1686 = vmul.f32 %v1622, %v1678
        %v1687 = vmul.f32 %v1623, %v1679
        %v1688 = vmul.f32 %v1624, %v1680
        %v1689 = vmul.f32 %v1625, %v1681
        %v1690 = vmul.f32 %v1626, %v1682
        %v1691 = vpack.c.bf16 %v1685, %v1683
        %v1692 = vpack.c.bf16 %v1686, %v1684
        %v1693 = vpack.c.bf16 %v1689, %v1687
        %v1694 = vpack.c.bf16 %v1690, %v1688
        %v1695 = vld [vmem:[#allocation7] sm:$0xf]
        %v1696 = vld [vmem:[#allocation7 + $0x4] sm:$0xf]
        %v1697 = vld [vmem:[#allocation7 + $0x8] sm:$0xf]
        %v1698 = vld [vmem:[#allocation7 + $0xc] sm:$0xf]
        %v1699 = vld [vmem:[#allocation7 + $0x10] sm:$0xf]
        %v1700 = vld [vmem:[#allocation7 + $0x14] sm:$0xf]
        %v1701 = vld [vmem:[#allocation7 + $0x18] sm:$0xf]
        %v1702 = vld [vmem:[#allocation7 + $0x1c] sm:$0xf]
        %v1703 = vld [vmem:[#allocation7 + $0x20] sm:$0xf]
        %v1704 = vld [vmem:[#allocation7 + $0x24] sm:$0xf]
        %v1705 = vld [vmem:[#allocation7 + $0x28] sm:$0xf]
        %v1706 = vld [vmem:[#allocation7 + $0x2c] sm:$0xf]
        %v1707 = vld [vmem:[#allocation7 + $0x30] sm:$0xf]
        %v1708 = vld [vmem:[#allocation7 + $0x34] sm:$0xf]
        %v1709 = vld [vmem:[#allocation7 + $0x38] sm:$0xf]
        %v1710 = vld [vmem:[#allocation7 + $0x3c] sm:$0xf]
        %v1711 = vld [vmem:[#allocation7 + $0x40] sm:$0xf]
        %v1712 = vld [vmem:[#allocation7 + $0x44] sm:$0xf]
        %v1713 = vld [vmem:[#allocation7 + $0x48] sm:$0xf]
        %v1714 = vld [vmem:[#allocation7 + $0x4c] sm:$0xf]
        %v1715 = vld [vmem:[#allocation7 + $0x50] sm:$0xf]
        %v1716 = vld [vmem:[#allocation7 + $0x54] sm:$0xf]
        %v1717 = vld [vmem:[#allocation7 + $0x58] sm:$0xf]
        %v1718 = vld [vmem:[#allocation7 + $0x5c] sm:$0xf]
        %v1719 = vld [vmem:[#allocation7 + $0x60] sm:$0xf]
        %v1720 = vld [vmem:[#allocation7 + $0x64] sm:$0xf]
        %v1721 = vld [vmem:[#allocation7 + $0x68] sm:$0xf]
        %v1722 = vld [vmem:[#allocation7 + $0x6c] sm:$0xf]
        %v1723 = vld [vmem:[#allocation7 + $0x70] sm:$0xf]
        %v1724 = vld [vmem:[#allocation7 + $0x74] sm:$0xf]
        %v1725 = vld [vmem:[#allocation7 + $0x78] sm:$0xf]
        %v1726 = vld [vmem:[#allocation7 + $0x7c] sm:$0xf]
        %v1727 = vld [vmem:[%s12] sm:$0x1]
        %v1729 = vperm.slane %v1727, 0
        %v1763 = vunpack.c.l.b16 %v1695
        %v1764 = vunpack.c.l.b16 %v1696
        %v1765 = vunpack.c.l.b16 %v1697
        %v1766 = vunpack.c.l.b16 %v1698
        %v1767 = vunpack.c.l.b16 %v1699
        %v1768 = vunpack.c.l.b16 %v1700
        %v1769 = vunpack.c.l.b16 %v1701
        %v1770 = vunpack.c.l.b16 %v1702
        %v1771 = vunpack.c.l.b16 %v1703
        %v1772 = vunpack.c.l.b16 %v1704
        %v1773 = vunpack.c.l.b16 %v1705
        %v1774 = vunpack.c.l.b16 %v1706
        %v1775 = vunpack.c.l.b16 %v1707
        %v1776 = vunpack.c.l.b16 %v1708
        %v1777 = vunpack.c.l.b16 %v1709
        %v1778 = vunpack.c.l.b16 %v1710
        %v1779 = vunpack.c.l.b16 %v1711
        %v1780 = vunpack.c.l.b16 %v1712
        %v1781 = vunpack.c.l.b16 %v1713
        %v1782 = vunpack.c.l.b16 %v1714
        %v1783 = vunpack.c.l.b16 %v1715
        %v1784 = vunpack.c.l.b16 %v1716
        %v1785 = vunpack.c.l.b16 %v1717
        %v1786 = vunpack.c.l.b16 %v1718
        %v1787 = vunpack.c.l.b16 %v1719
        %v1788 = vunpack.c.l.b16 %v1720
        %v1789 = vunpack.c.l.b16 %v1721
        %v1790 = vunpack.c.l.b16 %v1722
        %v1791 = vunpack.c.l.b16 %v1723
        %v1792 = vunpack.c.l.b16 %v1724
        %v1793 = vunpack.c.l.b16 %v1725
        %v1794 = vunpack.c.l.b16 %v1726
        %v1795 = vpack.c.b16 %v1764, %v1763
        %v1796 = vpack.c.b16 %v1766, %v1765
        %v1797 = vpack.c.b16 %v1768, %v1767
        %v1798 = vpack.c.b16 %v1770, %v1769
        %v1799 = vpack.c.b16 %v1772, %v1771
        %v1800 = vpack.c.b16 %v1774, %v1773
        %v1801 = vpack.c.b16 %v1776, %v1775
        %v1802 = vpack.c.b16 %v1778, %v1777
        %v1803 = vpack.c.b16 %v1780, %v1779
        %v1804 = vpack.c.b16 %v1782, %v1781
        %v1805 = vpack.c.b16 %v1784, %v1783
        %v1806 = vpack.c.b16 %v1786, %v1785
        %v1807 = vpack.c.b16 %v1788, %v1787
        %v1808 = vpack.c.b16 %v1790, %v1789
        %v1809 = vpack.c.b16 %v1792, %v1791
        %v1810 = vpack.c.b16 %v1794, %v1793
        %1827 = vmatpush.bf16.msra.mxu0 %v1802
        %1828 = vmatpush.bf16.msra.mxu0 %v1801
        %1829 = vmatpush.bf16.msra.mxu0 %v1800
        %1830 = vmatpush.bf16.msra.mxu0 %v1799
        %1831 = vmatpush.bf16.msra.mxu0 %v1798
        %1832 = vmatpush.bf16.msra.mxu0 %v1797
        %1833 = vmatpush.bf16.msra.mxu0 %v1796
        %1834 = vmatpush.bf16.msra.mxu0 %v1795
        %1835 = vmatmul.bf16.gmra.mxu0 %v1691
        %v1836 = vpop.f32.mrf.mxu0
        %v1837 = vadd.f32 %v1729, %v1836
        %v1838 = vpop.f32.mrf.mxu0
        %v1839 = vadd.f32 %v1729, %v1838
        %1840 = vmatmul.bf16.gmra.mxu0 %v1693
        %v1841 = vpop.f32.mrf.mxu0
        %v1842 = vadd.f32 %v1729, %v1841
        %v1843 = vpop.f32.mrf.mxu0
        %v1844 = vadd.f32 %v1729, %v1843
        %1845 = vdwg.mxu0
        %1846 = vmatpush.bf16.msra.mxu0 %v1810
        %1847 = vmatpush.bf16.msra.mxu0 %v1809
        %1848 = vmatpush.bf16.msra.mxu0 %v1808
        %1849 = vmatpush.bf16.msra.mxu0 %v1807
        %1850 = vmatpush.bf16.msra.mxu0 %v1806
        %1851 = vmatpush.bf16.msra.mxu0 %v1805
        %1852 = vmatpush.bf16.msra.mxu0 %v1804
        %1853 = vmatpush.bf16.msra.mxu0 %v1803
        %1854 = vmatmul.bf16.gmra.mxu0 %v1692
        %v1855 = vpop.f32.mrf.mxu0
        %v1856 = vadd.f32 %v1837, %v1855
        %v1857 = vpop.f32.mrf.mxu0
        %v1858 = vadd.f32 %v1839, %v1857
        %1859 = vmatmul.bf16.gmra.mxu0 %v1694
        %v1860 = vpop.f32.mrf.mxu0
        %v1861 = vadd.f32 %v1842, %v1860
        %v1862 = vpop.f32.mrf.mxu0
        %v1863 = vadd.f32 %v1844, %v1862
        %1864 = vdwg.mxu0
        %v1865 = vadd.f32 %v1377, %v1856
        %v1866 = vadd.f32 %v1378, %v1858
        %v1867 = vadd.f32 %v1379, %v1861
        %v1868 = vadd.f32 %v1380, %v1863
        %1869 = vst [vmem:[%s494] sm:$0xff] %v1865
        %1870 = vst [vmem:[%s494 + $0x8] sm:$0xff] %v1866
        %1871 = vst [vmem:[%s494 + $0x10] sm:$0xff] %v1867
        %1872 = vst [vmem:[%s494 + $0x18] sm:$0xff] %v1868
        %s1873 = sand.u32 %s317, 1
        %s1874 = scalar_lea.sflag [#allocation4], %s1873
        %s1875 = sand.u32 %s317, 1
        %s1876 = smul.addr %s1875, 32
        %s1877 = scalar_lea.vmem [#allocation8], %s1876
        // Predicated region
        $region85: #{tpu_custom_call.1} parent=71 // pred_check
          %p1878 = pneg %p327
        $region86: #{tpu_custom_call.1} parent=71 // pred_check_branch
          %1880 = sbr.rel (%p1878) target = $region88
        $region87: #{tpu_custom_call.1} parent=71 // pred_region
          %s1881 = smul.u32 2, %s31
          %1883 = vsyncadd %s1874, 0
          %s1884 = smul.addr %s1881, 2
          %s1885 = smul.addr %s1884, 8
          %s1886 = scalar_lea.hbm %s13, %s1885
          %s1887 = sshll.u32 %s1877, 4
          %s1888 = int_to_ptr.vmem [resolvable:$true] %s1887
          %s1889 = sshll.u32 %s1886, 4
          %s1890 = int_to_ptr.hbm [resolvable:$true] %s1889
          %1895 = dma.vmem_to_hbm [thread:$0]  %s1888, 512, %s1890, %s1874, 128, 128, 8
        $region88: #{tpu_custom_call.1} parent=71 // pred_fallthru
          _
      $region72: #{tpu_custom_call.1} parent=5 // pred_fallthru
        _
      %p1896 = scmp.le.s32.totalorder 2, %s26
      // Predicated region
      $region89: #{tpu_custom_call.1} parent=5 // pred_check
        %p1897 = pneg %p1896
      $region90: #{tpu_custom_call.1} parent=5 // pred_check_branch
        %1899 = sbr.rel (%p1897) target = $region92
      $region91: #{tpu_custom_call.1} parent=5 // pred_region
        %s1900 = ssub.s32 %s26, 2
        // Predicated region
        $region93: #{tpu_custom_call.1} parent=91 // pred_check
          %p1901 = pneg %p333
        $region94: #{tpu_custom_call.1} parent=91 // pred_check_branch
          %1903 = sbr.rel (%p1901) target = $region96
        $region95: #{tpu_custom_call.1} parent=91 // pred_region
          %s1904 = sand.u32 %s318, 1
          %s1905 = scalar_lea.sflag [#allocation4], %s1904
          %s1906 = sand.u32 %s318, 1
          %s1907 = smul.addr %s1906, 32
          %s1908 = scalar_lea.vmem [#allocation8], %s1907
          %1910 = dma.done %s1905, 512
        $region96: #{tpu_custom_call.1} parent=91 // pred_fallthru
          _
      $region92: #{tpu_custom_call.1} parent=5 // pred_fallthru
        _
    $region6: #{tpu_custom_call.1} parent=1 // loop_footer
      %s30 = sadd.s32 1, %s26
    $region7: #{tpu_custom_call.1} parent=1 // loop_footer_branch
      %25 = sbr.rel target = $region3
    $region8: #{tpu_custom_call.1} parent=1 // loop_exit
      _
    %1911 = vsyncpa [#allocation3], 1
    %s1912 = scalar_lea.sflag [#allocation3], 1
    %1913 = vsyncpa %s1912, 1
    %1914 = vsyncpa [#allocation6], 1
    %1915 = vsyncpa [#allocation4], 1
    %s1916 = scalar_lea.sflag [#allocation4], 1
    %1917 = vsyncpa %s1916, 1

</llo_original>
